<compile_context>
chip_gen: v5e
topology: v5e:2x2
jax: 0.10.0
libtpu: 0.0.40
codegen_flags: <defaults>
</compile_context>

<pallas_src>
import math
import functools

import jax
import jax.numpy as jnp
from jax.experimental import pallas as pl
from jax.experimental.pallas import tpu as pltpu


# ----------------------------- Pallas kernel --------------------------------

def _layer_norm(x, gamma, beta, eps=1e-5):
    mean = jnp.mean(x, axis=-1, keepdims=True)
    var = jnp.mean((x - mean) ** 2, axis=-1, keepdims=True)
    return (x - mean) * jax.lax.rsqrt(var + eps) * gamma + beta


def encoder_stack_kernel(n_heads, batch, seq,
                         x_ref, mask_ref, kpad_ref,
                         wqkv_ref, bqkv_ref, wo_ref, bo_ref,
                         g1_ref, be1_ref, w1_ref, b1_ref,
                         w2_ref, b2_ref, g2_ref, be2_ref,
                         o_ref,
                         bias_scratch, y_scratch, ff_scratch):
    """grid = (n_layers, FF_tiles).

    o_ref      (B*S, D) f32 : residual stream, resident in VMEM for the whole grid.
    x_ref      (B*S, D) f32 : embedded tokens (read once at grid step (0,0)).
    mask_ref   (S, S), kpad_ref (B, S): additive biases (0 or -1e30).
    Per-layer weights are pre-transposed (x @ W + b), unpadded, bf16 for the
    big matmuls; 1/sqrt(Dh) is folded into the Q columns.  w1/b1/w2 arrive as
    one dim_feedforward tile per grid step.
    """
    B, S, H = batch, seq, n_heads
    R, D = o_ref.shape
    Dh = D // H
    layer = pl.program_id(0)
    fstep = pl.program_id(1)
    nf = pl.num_programs(1)

    # Grid step (0,0): load the embedded tokens into the resident residual
    # stream and build the (B,S,S) additive attention bias once.
    @pl.when(jnp.logical_and(layer == 0, fstep == 0))
    def _():
        o_ref[...] = x_ref[...]
        bias_scratch[...] = (mask_ref[...][None, :, :]
                             + kpad_ref[...][:, None, :])

    # ---- attention + add&norm1: once per layer (first FF tile) ----
    @pl.when(fstep == 0)
    def _():
        x = o_ref[...]                                           # (R, D) f32

        # fused QKV projection: bf16 weights / activations, f32 accumulate
        qkv = jnp.dot(x.astype(jnp.bfloat16), wqkv_ref[0],
                      preferred_element_type=jnp.float32) + bqkv_ref[0]   # (R, 3D)
        q = qkv[:, 0 * D:1 * D].reshape(B, S, D)
        k = qkv[:, 1 * D:2 * D].reshape(B, S, D)
        v = qkv[:, 2 * D:3 * D].reshape(B, S, D)
        bias = bias_scratch[...]                                 # (B, S, S)

        # multi-head self-attention (bf16 MXU operands, f32 accumulation)
        ctx_heads = []
        for h in range(H):                         # static unroll over heads
            qh = q[:, :, h * Dh:(h + 1) * Dh].astype(jnp.bfloat16)
            kh = k[:, :, h * Dh:(h + 1) * Dh].astype(jnp.bfloat16)
            vh = v[:, :, h * Dh:(h + 1) * Dh].astype(jnp.bfloat16)
            s = jnp.einsum('bqd,bkd->bqk', qh, kh,
                           preferred_element_type=jnp.float32) + bias     # (B,S,S)
            m = jnp.max(s, axis=-1, keepdims=True)
            p = jnp.exp(s - m)
            p = p * pl.reciprocal(jnp.sum(p, axis=-1, keepdims=True), approx=True)
            ctx_heads.append(jnp.einsum('bqk,bkd->bqd', p.astype(jnp.bfloat16),
                                        vh, preferred_element_type=jnp.float32))
        ctx = jnp.concatenate(ctx_heads, axis=-1).reshape(R, D)

        attn = jnp.dot(ctx.astype(jnp.bfloat16), wo_ref[0],
                       preferred_element_type=jnp.float32) + bo_ref[0]    # (R, D)

        # add & norm 1 (post-norm, nn.TransformerEncoderLayer default)
        y_scratch[...] = _layer_norm(x + attn, g1_ref[0], be1_ref[0])
        ff_scratch[...] = jnp.zeros_like(ff_scratch)

    # ---- feed-forward (ReLU), one dim_feedforward tile per grid step ----
    y = y_scratch[...]
    h1 = jnp.maximum(
        jnp.dot(y.astype(jnp.bfloat16), w1_ref[0],
                preferred_element_type=jnp.float32) + b1_ref[0], 0.0)      # (R, tf)
    ff_scratch[...] += jnp.dot(h1.astype(jnp.bfloat16), w2_ref[0],
                               preferred_element_type=jnp.float32)         # (R, D)

    # ---- add & norm 2 on the last FF tile; write the residual stream ----
    @pl.when(fstep == nf - 1)
    def _():
        o_ref[...] = _layer_norm(y + ff_scratch[...] + b2_ref[0],
                                 g2_ref[0], be2_ref[0])


def run_encoder_stack(x, mask_bias, kpad_bias, p, n_heads, batch, seq):
    """x: (B*S, D) f32 token rows.  Runs all layers in one pallas_call."""
    R, D = x.shape
    L = p["wqkv"].shape[0]
    D3 = p["wqkv"].shape[2]
    FF = p["w1"].shape[2]
    # dim_feedforward tile: multiple of 128 lanes, divides FF
    ff_tile = 512 if (FF % 512 == 0 and FF > 512) else FF
    NF = FF // ff_tile

    def const_spec(shape):
        return pl.BlockSpec(shape, lambda l, f: (0,) * len(shape))

    def layer_spec(shape2d):
        return pl.BlockSpec((1,) + shape2d, lambda l, f: (l, 0, 0))

    in_specs = [
        const_spec((R, D)),                 # embedded tokens
        const_spec(mask_bias.shape),        # (S, S) additive attn-mask bias
        const_spec(kpad_bias.shape),        # (B, S) additive key-padding bias
        layer_spec((D, D3)), layer_spec((1, D3)),            # qkv proj (unpadded)
        layer_spec((D, D)),  layer_spec((1, D)),              # out proj
        layer_spec((1, D)),  layer_spec((1, D)),              # norm1 gamma/beta
        pl.BlockSpec((1, D, ff_tile), lambda l, f: (l, 0, f)),  # linear1 N-tile
        pl.BlockSpec((1, 1, ff_tile), lambda l, f: (l, 0, f)),  # b1 tile
        pl.BlockSpec((1, ff_tile, D), lambda l, f: (l, f, 0)),  # linear2 K-tile
        layer_spec((1, D)),                                     # b2
        layer_spec((1, D)),  layer_spec((1, D)),              # norm2 gamma/beta
    ]

    # VMEM budget from actual block sizes (x2 for double buffering + margin).
    bf2, f4 = 2, 4
    per_step_weight_bytes = (D * D3 * bf2 + D3 * f4 + D * D * bf2 + D * f4
                             + 4 * D * f4
                             + D * ff_tile * bf2 + ff_tile * f4
                             + ff_tile * D * bf2 + D * f4)
    const_bytes = R * D * f4 + mask_bias.size * f4 + kpad_bias.size * f4
    out_bytes = R * D * f4
    scratch_bytes = batch * seq * seq * f4 + 2 * R * D * f4
    vmem_bytes = 2 * (per_step_weight_bytes + const_bytes + out_bytes) + scratch_bytes
    vmem_limit = int(min(128 * 1024 * 1024,
                         max(16 * 1024 * 1024, 2 * vmem_bytes + (2 << 20))))

    scratch_shapes = [
        pltpu.VMEM((batch, seq, seq), jnp.float32),   # persistent attn bias
        pltpu.VMEM((R, D), jnp.float32),              # y = LN1(x + attn)
        pltpu.VMEM((R, D), jnp.float32),              # FFN accumulator
    ]

    kernel = functools.partial(encoder_stack_kernel, n_heads, batch, seq)
    return pl.pallas_call(
        kernel,
        out_shape=jax.ShapeDtypeStruct((R, D), jnp.float32),
        grid=(L, NF),
        in_specs=in_specs,
        out_specs=pl.BlockSpec((R, D), lambda l, f: (0, 0)),
        scratch_shapes=scratch_shapes,
        input_output_aliases={0: 0},    # donate the (R, D) embedded-token buffer
        compiler_params=pltpu.CompilerParams(
            dimension_semantics=("arbitrary", "arbitrary"),
            vmem_limit_bytes=vmem_limit),
    )(x, mask_bias, kpad_bias,
      p["wqkv"], p["bqkv"], p["wo"], p["bo"],
      p["g1"], p["be1"], p["w1"], p["b1"],
      p["w2"], p["b2"], p["g2"], p["be2"])


# ------------------------- parameter construction ---------------------------

def make_positional_encoding(d_model, max_len=2000):
    position = jnp.arange(0, max_len, dtype=jnp.float32)[:, None]
    div_term = jnp.exp(
        jnp.arange(0, d_model, 2, dtype=jnp.float32) * (-math.log(10000.0) / d_model))
    pe = jnp.zeros((max_len, d_model), dtype=jnp.float32)
    pe = pe.at[:, 0::2].set(jnp.sin(position * div_term))
    pe = pe.at[:, 1::2].set(jnp.cos(position * div_term))
    return pe  # (max_len, d_model)


def init_layer_params(key, d_model, ff_dim):
    k = jax.random.split(key, 6)
    s = 0.02
    return dict(
        wq=s * jax.random.normal(k[0], (d_model, d_model), jnp.float32),
        wk=s * jax.random.normal(k[1], (d_model, d_model), jnp.float32),
        wv=s * jax.random.normal(k[2], (d_model, d_model), jnp.float32),
        bq=jnp.zeros((d_model,), jnp.float32),
        bk=jnp.zeros((d_model,), jnp.float32),
        bv=jnp.zeros((d_model,), jnp.float32),
        wo=s * jax.random.normal(k[3], (d_model, d_model), jnp.float32),
        bo=jnp.zeros((d_model,), jnp.float32),
        g1=jnp.ones((d_model,), jnp.float32), be1=jnp.zeros((d_model,), jnp.float32),
        w1=s * jax.random.normal(k[4], (d_model, ff_dim), jnp.float32),
        b1=jnp.zeros((ff_dim,), jnp.float32),
        w2=s * jax.random.normal(k[5], (ff_dim, d_model), jnp.float32),
        b2=jnp.zeros((d_model,), jnp.float32),
        g2=jnp.ones((d_model,), jnp.float32), be2=jnp.zeros((d_model,), jnp.float32),
    )


def pack_layers_for_kernel(layers, n_heads):
    """Stack per-layer weights (leading layer axis), UNPADDED.  Fold 1/sqrt(Dh)
    into the Q columns (and Q bias), pre-transpose for x @ W + b, and cast the
    big matmul weights to bf16 (biases / LayerNorm params stay f32)."""
    D = layers[0]["wq"].shape[0]
    Dh = D // n_heads
    inv = 1.0 / math.sqrt(Dh)

    names = ["wqkv", "bqkv", "wo", "bo", "g1", "be1",
             "w1", "b1", "w2", "b2", "g2", "be2"]
    stacked = {n: [] for n in names}
    for lp in layers:
        stacked["wqkv"].append(jnp.concatenate(
            [lp["wq"] * inv, lp["wk"], lp["wv"]], axis=1))            # (D, 3D)
        stacked["bqkv"].append(jnp.concatenate(
            [lp["bq"] * inv, lp["bk"], lp["bv"]])[None, :])           # (1, 3D)
        stacked["wo"].append(lp["wo"])                                # (D, D)
        stacked["bo"].append(lp["bo"][None, :])
        stacked["g1"].append(lp["g1"][None, :]); stacked["be1"].append(lp["be1"][None, :])
        stacked["w1"].append(lp["w1"]);          stacked["b1"].append(lp["b1"][None, :])
        stacked["w2"].append(lp["w2"]);          stacked["b2"].append(lp["b2"][None, :])
        stacked["g2"].append(lp["g2"][None, :]); stacked["be2"].append(lp["be2"][None, :])

    out = {n: jnp.stack(v, axis=0) for n, v in stacked.items()}
    for n in ("wqkv", "wo", "w1", "w2"):
        out[n] = out[n].astype(jnp.bfloat16)
    return out


def init_params(key, v_size, d_model, n_layers, ff_dim, n_heads):
    keys = jax.random.split(key, 1 + n_layers)
    # embedding: uniform(-0.1, 0.1) as in _init_weights
    embedding = jax.random.uniform(keys[0], (v_size, d_model), jnp.float32, -0.1, 0.1)
    layers = [init_layer_params(keys[1 + i], d_model, ff_dim) for i in range(n_layers)]
    return {"embedding": embedding, "packed": pack_layers_for_kernel(layers, n_heads)}


# ------------------------------ model glue ----------------------------------

def transformer_encoder_forward(params, src, src_mask, src_key_padding_mask,
                                d_model, n_heads, pe):
    """src: (S, B) int32; src_mask: (S, S) bool (True = disallow);
    src_key_padding_mask: (B, S) bool (True = pad). Returns (S, B, D)."""
    S, B = src.shape

    # embedding gather directly in (B, S, D); dropout p=0.0 -> identity
    x = jnp.take(params["embedding"], src.T, axis=0) * math.sqrt(d_model)   # (B,S,D)
    x = (x + pe[:S][None, :, :]).astype(jnp.float32)
    x = x.reshape(B * S, d_model)                                           # token rows

    # small additive biases only; the (B,S,S) bias is built inside the kernel.
    NEG = jnp.float32(-1e30)   # large finite -> no NaN on fully-masked rows
    mask_bias = jnp.where(src_mask, NEG, 0.0).astype(jnp.float32)           # (S, S)
    kpad_bias = jnp.where(src_key_padding_mask, NEG, 0.0).astype(jnp.float32)  # (B, S)

    out = run_encoder_stack(x, mask_bias, kpad_bias, params["packed"],
                            n_heads, B, S)                                  # (B*S, D)
    out = out.reshape(B, S, d_model)
    return jnp.transpose(out, (1, 0, 2))                                    # (S, B, D)


# --------------------------------- main --------------------------------------

if __name__ == "__main__":
    V_SIZE, D_MODEL, N_LAYERS, N_HEADS = 50, 32, 2, 4
    FF_DIM = 2048  # nn.TransformerEncoderLayer default dim_feedforward
    S, B = 8, 2

    root = jax.random.PRNGKey(0)
    k_param, k_src = jax.random.split(root)

    params = init_params(k_param, V_SIZE, D_MODEL, N_LAYERS, FF_DIM, N_HEADS)
    pe = make_positional_encoding(D_MODEL, max_len=2000)

    src = jax.random.randint(k_src, (S, B), 0, V_SIZE, dtype=jnp.int32)        # (S, B)
    # attn mask: causal-style bool mask (True = not allowed to attend)
    src_mask = jnp.triu(jnp.ones((S, S), dtype=bool), k=1)                     # (S, S)
    # key padding mask: last two positions of batch element 1 are padding
    src_key_padding_mask = jnp.zeros((B, S), dtype=bool).at[1, -2:].set(True)  # (B, S)

    out = transformer_encoder_forward(params, src, src_mask, src_key_padding_mask,
                                      D_MODEL, N_HEADS, pe)
    out = jax.block_until_ready(out)
    assert out.shape == (S, B, D_MODEL)
    assert bool(jnp.all(jnp.isfinite(out)))
    print("KERNEL_OK")
</pallas_src>

<mosaic_0001>
module attributes {stable_mosaic.version = 11 : i64} {
  func.func @encoder_stack_kernel(%arg0: i32, %arg1: i32, %arg2: memref<16x32xf32, #tpu.memory_space<vmem>>, %arg3: memref<8x8xf32, #tpu.memory_space<vmem>>, %arg4: memref<2x8xf32, #tpu.memory_space<vmem>>, %arg5: memref<1x32x96xbf16, #tpu.memory_space<vmem>>, %arg6: memref<1x1x96xf32, #tpu.memory_space<vmem>>, %arg7: memref<1x32x32xbf16, #tpu.memory_space<vmem>>, %arg8: memref<1x1x32xf32, #tpu.memory_space<vmem>>, %arg9: memref<1x1x32xf32, #tpu.memory_space<vmem>>, %arg10: memref<1x1x32xf32, #tpu.memory_space<vmem>>, %arg11: memref<1x32x512xbf16, #tpu.memory_space<vmem>>, %arg12: memref<1x1x512xf32, #tpu.memory_space<vmem>>, %arg13: memref<1x512x32xbf16, #tpu.memory_space<vmem>>, %arg14: memref<1x1x32xf32, #tpu.memory_space<vmem>>, %arg15: memref<1x1x32xf32, #tpu.memory_space<vmem>>, %arg16: memref<1x1x32xf32, #tpu.memory_space<vmem>>, %arg17: memref<16x32xf32, #tpu.memory_space<vmem>>, %arg18: memref<2x8x8xf32, #tpu.memory_space<vmem>>, %arg19: memref<16x32xf32, #tpu.memory_space<vmem>>, %arg20: memref<16x32xf32, #tpu.memory_space<vmem>>) attributes {dimension_semantics = [#tpu.dimension_semantics<arbitrary>, #tpu.dimension_semantics<arbitrary>], iteration_bounds = array<i64: 2, 4>, scalar_prefetch = 0 : i64, scratch_operands = 3 : i64, tpu.core_type = #tpu.core_type<tc>, window_params = [{pipeline_mode = #tpu.pipeline_mode<synchronous>, transform_indices = @transform_0, window_bounds = array<i64: 16, 32>}, {pipeline_mode = #tpu.pipeline_mode<synchronous>, transform_indices = @transform_1, window_bounds = array<i64: 8, 8>}, {pipeline_mode = #tpu.pipeline_mode<synchronous>, transform_indices = @transform_2, window_bounds = array<i64: 2, 8>}, {transform_indices = @transform_3, window_bounds = array<i64: 1, 32, 96>}, {transform_indices = @transform_4, window_bounds = array<i64: 1, 1, 96>}, {transform_indices = @transform_5, window_bounds = array<i64: 1, 32, 32>}, {transform_indices = @transform_6, window_bounds = array<i64: 1, 1, 32>}, {transform_indices = @transform_7, window_bounds = array<i64: 1, 1, 32>}, {transform_indices = @transform_8, window_bounds = array<i64: 1, 1, 32>}, {transform_indices = @transform_9, window_bounds = array<i64: 1, 32, 512>}, {transform_indices = @transform_10, window_bounds = array<i64: 1, 1, 512>}, {transform_indices = @transform_11, window_bounds = array<i64: 1, 512, 32>}, {transform_indices = @transform_12, window_bounds = array<i64: 1, 1, 32>}, {transform_indices = @transform_13, window_bounds = array<i64: 1, 1, 32>}, {transform_indices = @transform_14, window_bounds = array<i64: 1, 1, 32>}, {pipeline_mode = #tpu.pipeline_mode<synchronous>, transform_indices = @transform_15, window_bounds = array<i64: 16, 32>}]} {
    %c0_i32 = arith.constant 0 : i32
    %0 = arith.cmpi eq, %arg0, %c0_i32 : i32
    %c0_i32_0 = arith.constant 0 : i32
    %1 = arith.cmpi eq, %arg1, %c0_i32_0 : i32
    %2 = arith.andi %0, %1 : i1
    %3 = arith.extui %2 : i1 to i32
    %c0_i32_1 = arith.constant 0 : i32
    %4 = arith.cmpi ne, %3, %c0_i32_1 : i32
    scf.if %4 {
      %c0_21 = arith.constant 0 : index
      %c0_22 = arith.constant 0 : index
      %29 = vector.load %arg2[%c0_21, %c0_22] : memref<16x32xf32, #tpu.memory_space<vmem>>, vector<16x32xf32>
      %c0_23 = arith.constant 0 : index
      %c0_24 = arith.constant 0 : index
      %30 = vector.load %arg17[%c0_23, %c0_24] : memref<16x32xf32, #tpu.memory_space<vmem>>, vector<16x32xf32>
      tpu.vector_store %arg17[%c0_23, %c0_24], %29 {strides = array<i32>} : memref<16x32xf32, #tpu.memory_space<vmem>>, vector<16x32xf32>,
      %c0_25 = arith.constant 0 : index
      %c0_26 = arith.constant 0 : index
      %31 = vector.load %arg3[%c0_25, %c0_26] : memref<8x8xf32, #tpu.memory_space<vmem>>, vector<8x8xf32>
      %32 = vector.shape_cast %31 : vector<8x8xf32> to vector<1x8x8xf32>
      %c0_27 = arith.constant 0 : index
      %c0_28 = arith.constant 0 : index
      %33 = vector.load %arg4[%c0_27, %c0_28] : memref<2x8xf32, #tpu.memory_space<vmem>>, vector<2x8xf32>
      %34 = vector.shape_cast %33 : vector<2x8xf32> to vector<2x1x8xf32>
      %35 = vector.broadcast %32 : vector<1x8x8xf32> to vector<2x8x8xf32>
      %36 = vector.broadcast %34 : vector<2x1x8xf32> to vector<2x8x8xf32>
      %37 = arith.addf %35, %36 : vector<2x8x8xf32>
      %c0_29 = arith.constant 0 : index
      %c0_30 = arith.constant 0 : index
      %c0_31 = arith.constant 0 : index
      %38 = vector.load %arg18[%c0_29, %c0_30, %c0_31] : memref<2x8x8xf32, #tpu.memory_space<vmem>>, vector<2x8x8xf32>
      tpu.vector_store %arg18[%c0_29, %c0_30, %c0_31], %37 {strides = array<i32>} : memref<2x8x8xf32, #tpu.memory_space<vmem>>, vector<2x8x8xf32>,
    } else {
    }
    %c0_i32_2 = arith.constant 0 : i32
    %5 = arith.cmpi eq, %arg1, %c0_i32_2 : i32
    %6 = arith.extui %5 : i1 to i32
    %c0_i32_3 = arith.constant 0 : i32
    %7 = arith.cmpi ne, %6, %c0_i32_3 : i32
    scf.if %7 {
      %c0_21 = arith.constant 0 : index
      %c0_22 = arith.constant 0 : index
      %29 = vector.load %arg17[%c0_21, %c0_22] : memref<16x32xf32, #tpu.memory_space<vmem>>, vector<16x32xf32>
      %30 = arith.truncf %29 : vector<16x32xf32> to vector<16x32xbf16>
      %c0_23 = arith.constant 0 : index
      %c0_24 = arith.constant 0 : index
      %c0_25 = arith.constant 0 : index
      %31 = vector.load %arg5[%c0_23, %c0_24, %c0_25] : memref<1x32x96xbf16, #tpu.memory_space<vmem>>, vector<1x32x96xbf16>
      %32 = vector.shape_cast %31 : vector<1x32x96xbf16> to vector<32x96xbf16>
      %cst_26 = arith.constant dense<0.000000e+00> : vector<16x96xf32>
      %33 = tpu.matmul %30, %32, %cst_26 {dimension_numbers = #tpu.dot_dimension_numbers<[1], [0], [0], [1], [0, 0, 1, 1], [], []>} : vector<16x32xbf16>, vector<32x96xbf16>, vector<16x96xf32> -> vector<16x96xf32>
      %c0_27 = arith.constant 0 : index
      %c0_28 = arith.constant 0 : index
      %c0_29 = arith.constant 0 : index
      %34 = vector.load %arg6[%c0_27, %c0_28, %c0_29] : memref<1x1x96xf32, #tpu.memory_space<vmem>>, vector<1x1x96xf32>
      %35 = vector.shape_cast %34 : vector<1x1x96xf32> to vector<1x96xf32>
      %36 = vector.broadcast %35 : vector<1x96xf32> to vector<16x96xf32>
      %37 = arith.addf %33, %36 : vector<16x96xf32>
      %38 = vector.extract_strided_slice %37 {offsets = [0, 0], sizes = [16, 32], strides = [1, 1]} : vector<16x96xf32> to vector<16x32xf32>
      %39 = vector.shape_cast %38 : vector<16x32xf32> to vector<2x8x32xf32>
      %40 = vector.extract_strided_slice %37 {offsets = [0, 32], sizes = [16, 32], strides = [1, 1]} : vector<16x96xf32> to vector<16x32xf32>
      %41 = vector.shape_cast %40 : vector<16x32xf32> to vector<2x8x32xf32>
      %42 = vector.extract_strided_slice %37 {offsets = [0, 64], sizes = [16, 32], strides = [1, 1]} : vector<16x96xf32> to vector<16x32xf32>
      %43 = vector.shape_cast %42 : vector<16x32xf32> to vector<2x8x32xf32>
      %c0_30 = arith.constant 0 : index
      %c0_31 = arith.constant 0 : index
      %c0_32 = arith.constant 0 : index
      %44 = vector.load %arg18[%c0_30, %c0_31, %c0_32] : memref<2x8x8xf32, #tpu.memory_space<vmem>>, vector<2x8x8xf32>
      %45 = vector.extract_strided_slice %39 {offsets = [0, 0, 0], sizes = [2, 8, 8], strides = [1, 1, 1]} : vector<2x8x32xf32> to vector<2x8x8xf32>
      %46 = arith.truncf %45 : vector<2x8x8xf32> to vector<2x8x8xbf16>
      %47 = vector.extract_strided_slice %41 {offsets = [0, 0, 0], sizes = [2, 8, 8], strides = [1, 1, 1]} : vector<2x8x32xf32> to vector<2x8x8xf32>
      %48 = arith.truncf %47 : vector<2x8x8xf32> to vector<2x8x8xbf16>
      %49 = vector.extract_strided_slice %43 {offsets = [0, 0, 0], sizes = [2, 8, 8], strides = [1, 1, 1]} : vector<2x8x32xf32> to vector<2x8x8xf32>
      %50 = arith.truncf %49 : vector<2x8x8xf32> to vector<2x8x8xbf16>
      "tpu.trace_start"() <{level = 10 : i32, message = "bqd,bkd->bqk"}> : () -> ()
      %cst_33 = arith.constant dense<0.000000e+00> : vector<2x8x8xf32>
      %51 = tpu.matmul %46, %48, %cst_33 {dimension_numbers = #tpu.dot_dimension_numbers<[2], [2], [1], [1], [0, 0, 0, 1, 1, 1], [0], [0]>} : vector<2x8x8xbf16>, vector<2x8x8xbf16>, vector<2x8x8xf32> -> vector<2x8x8xf32>
      "tpu.trace_stop"() : () -> ()
      %52 = arith.addf %51, %44 : vector<2x8x8xf32>
      %cst_34 = arith.constant dense<0xFF800000> : vector<2x8xf32>
      %53 = vector.multi_reduction <maximumf>, %52, %cst_34 [2] : vector<2x8x8xf32> to vector<2x8xf32>
      %54 = vector.shape_cast %53 : vector<2x8xf32> to vector<2x8x1xf32>
      %55 = vector.broadcast %54 : vector<2x8x1xf32> to vector<2x8x8xf32>
      %56 = arith.subf %52, %55 : vector<2x8x8xf32>
      %57 = math.exp %56 : vector<2x8x8xf32>
      %cst_35 = arith.constant dense<0.000000e+00> : vector<2x8xf32>
      %58 = vector.multi_reduction <add>, %57, %cst_35 [2] : vector<2x8x8xf32> to vector<2x8xf32>
      %59 = vector.shape_cast %58 : vector<2x8xf32> to vector<2x8x1xf32>
      %60 = tpu.reciprocal %59 {approx = true} : vector<2x8x1xf32> -> vector<2x8x1xf32>
      %61 = vector.broadcast %60 : vector<2x8x1xf32> to vector<2x8x8xf32>
      %62 = arith.mulf %57, %61 : vector<2x8x8xf32>
      %63 = arith.truncf %62 : vector<2x8x8xf32> to vector<2x8x8xbf16>
      "tpu.trace_start"() <{level = 10 : i32, message = "bqk,bkd->bqd"}> : () -> ()
      %cst_36 = arith.constant dense<0.000000e+00> : vector<2x8x8xf32>
      %64 = tpu.matmul %63, %50, %cst_36 {dimension_numbers = #tpu.dot_dimension_numbers<[2], [1], [1], [2], [0, 0, 0, 1, 1, 2], [0], [0]>} : vector<2x8x8xbf16>, vector<2x8x8xbf16>, vector<2x8x8xf32> -> vector<2x8x8xf32>
      "tpu.trace_stop"() : () -> ()
      %65 = vector.extract_strided_slice %39 {offsets = [0, 0, 8], sizes = [2, 8, 8], strides = [1, 1, 1]} : vector<2x8x32xf32> to vector<2x8x8xf32>
      %66 = arith.truncf %65 : vector<2x8x8xf32> to vector<2x8x8xbf16>
      %67 = vector.extract_strided_slice %41 {offsets = [0, 0, 8], sizes = [2, 8, 8], strides = [1, 1, 1]} : vector<2x8x32xf32> to vector<2x8x8xf32>
      %68 = arith.truncf %67 : vector<2x8x8xf32> to vector<2x8x8xbf16>
      %69 = vector.extract_strided_slice %43 {offsets = [0, 0, 8], sizes = [2, 8, 8], strides = [1, 1, 1]} : vector<2x8x32xf32> to vector<2x8x8xf32>
      %70 = arith.truncf %69 : vector<2x8x8xf32> to vector<2x8x8xbf16>
      "tpu.trace_start"() <{level = 10 : i32, message = "bqd,bkd->bqk"}> : () -> ()
      %cst_37 = arith.constant dense<0.000000e+00> : vector<2x8x8xf32>
      %71 = tpu.matmul %66, %68, %cst_37 {dimension_numbers = #tpu.dot_dimension_numbers<[2], [2], [1], [1], [0, 0, 0, 1, 1, 1], [0], [0]>} : vector<2x8x8xbf16>, vector<2x8x8xbf16>, vector<2x8x8xf32> -> vector<2x8x8xf32>
      "tpu.trace_stop"() : () -> ()
      %72 = arith.addf %71, %44 : vector<2x8x8xf32>
      %cst_38 = arith.constant dense<0xFF800000> : vector<2x8xf32>
      %73 = vector.multi_reduction <maximumf>, %72, %cst_38 [2] : vector<2x8x8xf32> to vector<2x8xf32>
      %74 = vector.shape_cast %73 : vector<2x8xf32> to vector<2x8x1xf32>
      %75 = vector.broadcast %74 : vector<2x8x1xf32> to vector<2x8x8xf32>
      %76 = arith.subf %72, %75 : vector<2x8x8xf32>
      %77 = math.exp %76 : vector<2x8x8xf32>
      %cst_39 = arith.constant dense<0.000000e+00> : vector<2x8xf32>
      %78 = vector.multi_reduction <add>, %77, %cst_39 [2] : vector<2x8x8xf32> to vector<2x8xf32>
      %79 = vector.shape_cast %78 : vector<2x8xf32> to vector<2x8x1xf32>
      %80 = tpu.reciprocal %79 {approx = true} : vector<2x8x1xf32> -> vector<2x8x1xf32>
      %81 = vector.broadcast %80 : vector<2x8x1xf32> to vector<2x8x8xf32>
      %82 = arith.mulf %77, %81 : vector<2x8x8xf32>
      %83 = arith.truncf %82 : vector<2x8x8xf32> to vector<2x8x8xbf16>
      "tpu.trace_start"() <{level = 10 : i32, message = "bqk,bkd->bqd"}> : () -> ()
      %cst_40 = arith.constant dense<0.000000e+00> : vector<2x8x8xf32>
      %84 = tpu.matmul %83, %70, %cst_40 {dimension_numbers = #tpu.dot_dimension_numbers<[2], [1], [1], [2], [0, 0, 0, 1, 1, 2], [0], [0]>} : vector<2x8x8xbf16>, vector<2x8x8xbf16>, vector<2x8x8xf32> -> vector<2x8x8xf32>
      "tpu.trace_stop"() : () -> ()
      %85 = vector.extract_strided_slice %39 {offsets = [0, 0, 16], sizes = [2, 8, 8], strides = [1, 1, 1]} : vector<2x8x32xf32> to vector<2x8x8xf32>
      %86 = arith.truncf %85 : vector<2x8x8xf32> to vector<2x8x8xbf16>
      %87 = vector.extract_strided_slice %41 {offsets = [0, 0, 16], sizes = [2, 8, 8], strides = [1, 1, 1]} : vector<2x8x32xf32> to vector<2x8x8xf32>
      %88 = arith.truncf %87 : vector<2x8x8xf32> to vector<2x8x8xbf16>
      %89 = vector.extract_strided_slice %43 {offsets = [0, 0, 16], sizes = [2, 8, 8], strides = [1, 1, 1]} : vector<2x8x32xf32> to vector<2x8x8xf32>
      %90 = arith.truncf %89 : vector<2x8x8xf32> to vector<2x8x8xbf16>
      "tpu.trace_start"() <{level = 10 : i32, message = "bqd,bkd->bqk"}> : () -> ()
      %cst_41 = arith.constant dense<0.000000e+00> : vector<2x8x8xf32>
      %91 = tpu.matmul %86, %88, %cst_41 {dimension_numbers = #tpu.dot_dimension_numbers<[2], [2], [1], [1], [0, 0, 0, 1, 1, 1], [0], [0]>} : vector<2x8x8xbf16>, vector<2x8x8xbf16>, vector<2x8x8xf32> -> vector<2x8x8xf32>
      "tpu.trace_stop"() : () -> ()
      %92 = arith.addf %91, %44 : vector<2x8x8xf32>
      %cst_42 = arith.constant dense<0xFF800000> : vector<2x8xf32>
      %93 = vector.multi_reduction <maximumf>, %92, %cst_42 [2] : vector<2x8x8xf32> to vector<2x8xf32>
      %94 = vector.shape_cast %93 : vector<2x8xf32> to vector<2x8x1xf32>
      %95 = vector.broadcast %94 : vector<2x8x1xf32> to vector<2x8x8xf32>
      %96 = arith.subf %92, %95 : vector<2x8x8xf32>
      %97 = math.exp %96 : vector<2x8x8xf32>
      %cst_43 = arith.constant dense<0.000000e+00> : vector<2x8xf32>
      %98 = vector.multi_reduction <add>, %97, %cst_43 [2] : vector<2x8x8xf32> to vector<2x8xf32>
      %99 = vector.shape_cast %98 : vector<2x8xf32> to vector<2x8x1xf32>
      %100 = tpu.reciprocal %99 {approx = true} : vector<2x8x1xf32> -> vector<2x8x1xf32>
      %101 = vector.broadcast %100 : vector<2x8x1xf32> to vector<2x8x8xf32>
      %102 = arith.mulf %97, %101 : vector<2x8x8xf32>
      %103 = arith.truncf %102 : vector<2x8x8xf32> to vector<2x8x8xbf16>
      "tpu.trace_start"() <{level = 10 : i32, message = "bqk,bkd->bqd"}> : () -> ()
      %cst_44 = arith.constant dense<0.000000e+00> : vector<2x8x8xf32>
      %104 = tpu.matmul %103, %90, %cst_44 {dimension_numbers = #tpu.dot_dimension_numbers<[2], [1], [1], [2], [0, 0, 0, 1, 1, 2], [0], [0]>} : vector<2x8x8xbf16>, vector<2x8x8xbf16>, vector<2x8x8xf32> -> vector<2x8x8xf32>
      "tpu.trace_stop"() : () -> ()
      %105 = vector.extract_strided_slice %39 {offsets = [0, 0, 24], sizes = [2, 8, 8], strides = [1, 1, 1]} : vector<2x8x32xf32> to vector<2x8x8xf32>
      %106 = arith.truncf %105 : vector<2x8x8xf32> to vector<2x8x8xbf16>
      %107 = vector.extract_strided_slice %41 {offsets = [0, 0, 24], sizes = [2, 8, 8], strides = [1, 1, 1]} : vector<2x8x32xf32> to vector<2x8x8xf32>
      %108 = arith.truncf %107 : vector<2x8x8xf32> to vector<2x8x8xbf16>
      %109 = vector.extract_strided_slice %43 {offsets = [0, 0, 24], sizes = [2, 8, 8], strides = [1, 1, 1]} : vector<2x8x32xf32> to vector<2x8x8xf32>
      %110 = arith.truncf %109 : vector<2x8x8xf32> to vector<2x8x8xbf16>
      "tpu.trace_start"() <{level = 10 : i32, message = "bqd,bkd->bqk"}> : () -> ()
      %cst_45 = arith.constant dense<0.000000e+00> : vector<2x8x8xf32>
      %111 = tpu.matmul %106, %108, %cst_45 {dimension_numbers = #tpu.dot_dimension_numbers<[2], [2], [1], [1], [0, 0, 0, 1, 1, 1], [0], [0]>} : vector<2x8x8xbf16>, vector<2x8x8xbf16>, vector<2x8x8xf32> -> vector<2x8x8xf32>
      "tpu.trace_stop"() : () -> ()
      %112 = arith.addf %111, %44 : vector<2x8x8xf32>
      %cst_46 = arith.constant dense<0xFF800000> : vector<2x8xf32>
      %113 = vector.multi_reduction <maximumf>, %112, %cst_46 [2] : vector<2x8x8xf32> to vector<2x8xf32>
      %114 = vector.shape_cast %113 : vector<2x8xf32> to vector<2x8x1xf32>
      %115 = vector.broadcast %114 : vector<2x8x1xf32> to vector<2x8x8xf32>
      %116 = arith.subf %112, %115 : vector<2x8x8xf32>
      %117 = math.exp %116 : vector<2x8x8xf32>
      %cst_47 = arith.constant dense<0.000000e+00> : vector<2x8xf32>
      %118 = vector.multi_reduction <add>, %117, %cst_47 [2] : vector<2x8x8xf32> to vector<2x8xf32>
      %119 = vector.shape_cast %118 : vector<2x8xf32> to vector<2x8x1xf32>
      %120 = tpu.reciprocal %119 {approx = true} : vector<2x8x1xf32> -> vector<2x8x1xf32>
      %121 = vector.broadcast %120 : vector<2x8x1xf32> to vector<2x8x8xf32>
      %122 = arith.mulf %117, %121 : vector<2x8x8xf32>
      %123 = arith.truncf %122 : vector<2x8x8xf32> to vector<2x8x8xbf16>
      "tpu.trace_start"() <{level = 10 : i32, message = "bqk,bkd->bqd"}> : () -> ()
      %cst_48 = arith.constant dense<0.000000e+00> : vector<2x8x8xf32>
      %124 = tpu.matmul %123, %110, %cst_48 {dimension_numbers = #tpu.dot_dimension_numbers<[2], [1], [1], [2], [0, 0, 0, 1, 1, 2], [0], [0]>} : vector<2x8x8xbf16>, vector<2x8x8xbf16>, vector<2x8x8xf32> -> vector<2x8x8xf32>
      "tpu.trace_stop"() : () -> ()
      %125 = tpu.concatenate %64, %84, %104, %124 in 2 : vector<2x8x8xf32>, vector<2x8x8xf32>, vector<2x8x8xf32>, vector<2x8x8xf32> -> vector<2x8x32xf32>
      %126 = vector.shape_cast %125 : vector<2x8x32xf32> to vector<16x32xf32>
      %127 = arith.truncf %126 : vector<16x32xf32> to vector<16x32xbf16>
      %c0_49 = arith.constant 0 : index
      %c0_50 = arith.constant 0 : index
      %c0_51 = arith.constant 0 : index
      %128 = vector.load %arg7[%c0_49, %c0_50, %c0_51] : memref<1x32x32xbf16, #tpu.memory_space<vmem>>, vector<1x32x32xbf16>
      %129 = vector.shape_cast %128 : vector<1x32x32xbf16> to vector<32x32xbf16>
      %cst_52 = arith.constant dense<0.000000e+00> : vector<16x32xf32>
      %130 = tpu.matmul %127, %129, %cst_52 {dimension_numbers = #tpu.dot_dimension_numbers<[1], [0], [0], [1], [0, 0, 1, 1], [], []>} : vector<16x32xbf16>, vector<32x32xbf16>, vector<16x32xf32> -> vector<16x32xf32>
      %c0_53 = arith.constant 0 : index
      %c0_54 = arith.constant 0 : index
      %c0_55 = arith.constant 0 : index
      %131 = vector.load %arg8[%c0_53, %c0_54, %c0_55] : memref<1x1x32xf32, #tpu.memory_space<vmem>>, vector<1x1x32xf32>
      %132 = vector.shape_cast %131 : vector<1x1x32xf32> to vector<1x32xf32>
      %133 = vector.broadcast %132 : vector<1x32xf32> to vector<16x32xf32>
      %134 = arith.addf %130, %133 : vector<16x32xf32>
      %135 = arith.addf %29, %134 : vector<16x32xf32>
      %c0_56 = arith.constant 0 : index
      %c0_57 = arith.constant 0 : index
      %c0_58 = arith.constant 0 : index
      %136 = vector.load %arg9[%c0_56, %c0_57, %c0_58] : memref<1x1x32xf32, #tpu.memory_space<vmem>>, vector<1x1x32xf32>
      %137 = vector.shape_cast %136 : vector<1x1x32xf32> to vector<1x32xf32>
      %c0_59 = arith.constant 0 : index
      %c0_60 = arith.constant 0 : index
      %c0_61 = arith.constant 0 : index
      %138 = vector.load %arg10[%c0_59, %c0_60, %c0_61] : memref<1x1x32xf32, #tpu.memory_space<vmem>>, vector<1x1x32xf32>
      %139 = vector.shape_cast %138 : vector<1x1x32xf32> to vector<1x32xf32>
      %cst_62 = arith.constant dense<0.000000e+00> : vector<16xf32>
      %140 = vector.multi_reduction <add>, %135, %cst_62 [1] : vector<16x32xf32> to vector<16xf32>
      %141 = vector.shape_cast %140 : vector<16xf32> to vector<16x1xf32>
      %cst_63 = arith.constant 3.200000e+01 : f32
      %142 = vector.broadcast %cst_63 : f32 to vector<16x1xf32>
      %143 = arith.divf %141, %142 : vector<16x1xf32>
      %144 = vector.broadcast %143 : vector<16x1xf32> to vector<16x32xf32>
      %145 = arith.subf %135, %144 : vector<16x32xf32>
      %146 = arith.mulf %145, %145 : vector<16x32xf32>
      %cst_64 = arith.constant dense<0.000000e+00> : vector<16xf32>
      %147 = vector.multi_reduction <add>, %146, %cst_64 [1] : vector<16x32xf32> to vector<16xf32>
      %148 = vector.shape_cast %147 : vector<16xf32> to vector<16x1xf32>
      %cst_65 = arith.constant 3.200000e+01 : f32
      %149 = vector.broadcast %cst_65 : f32 to vector<16x1xf32>
      %150 = arith.divf %148, %149 : vector<16x1xf32>
      %151 = vector.broadcast %143 : vector<16x1xf32> to vector<16x32xf32>
      %152 = arith.subf %135, %151 : vector<16x32xf32>
      %cst_66 = arith.constant 9.99999974E-6 : f32
      %153 = vector.broadcast %cst_66 : f32 to vector<16x1xf32>
      %154 = arith.addf %150, %153 : vector<16x1xf32>
      %155 = math.rsqrt %154 : vector<16x1xf32>
      %156 = vector.broadcast %155 : vector<16x1xf32> to vector<16x32xf32>
      %157 = arith.mulf %152, %156 : vector<16x32xf32>
      %158 = vector.broadcast %137 : vector<1x32xf32> to vector<16x32xf32>
      %159 = arith.mulf %157, %158 : vector<16x32xf32>
      %160 = vector.broadcast %139 : vector<1x32xf32> to vector<16x32xf32>
      %161 = arith.addf %159, %160 : vector<16x32xf32>
      %c0_67 = arith.constant 0 : index
      %c0_68 = arith.constant 0 : index
      %162 = vector.load %arg19[%c0_67, %c0_68] : memref<16x32xf32, #tpu.memory_space<vmem>>, vector<16x32xf32>
      tpu.vector_store %arg19[%c0_67, %c0_68], %161 {strides = array<i32>} : memref<16x32xf32, #tpu.memory_space<vmem>>, vector<16x32xf32>,
      %cst_69 = arith.constant 0.000000e+00 : f32
      %163 = vector.broadcast %cst_69 : f32 to vector<16x32xf32>
      %c0_70 = arith.constant 0 : index
      %c0_71 = arith.constant 0 : index
      %164 = vector.load %arg20[%c0_70, %c0_71] : memref<16x32xf32, #tpu.memory_space<vmem>>, vector<16x32xf32>
      tpu.vector_store %arg20[%c0_70, %c0_71], %163 {strides = array<i32>} : memref<16x32xf32, #tpu.memory_space<vmem>>, vector<16x32xf32>,
    } else {
    }
    %c0 = arith.constant 0 : index
    %c0_4 = arith.constant 0 : index
    %8 = vector.load %arg19[%c0, %c0_4] : memref<16x32xf32, #tpu.memory_space<vmem>>, vector<16x32xf32>
    %9 = arith.truncf %8 : vector<16x32xf32> to vector<16x32xbf16>
    %c0_5 = arith.constant 0 : index
    %c0_6 = arith.constant 0 : index
    %c0_7 = arith.constant 0 : index
    %10 = vector.load %arg11[%c0_5, %c0_6, %c0_7] : memref<1x32x512xbf16, #tpu.memory_space<vmem>>, vector<1x32x512xbf16>
    %11 = vector.shape_cast %10 : vector<1x32x512xbf16> to vector<32x512xbf16>
    %cst = arith.constant dense<0.000000e+00> : vector<16x512xf32>
    %12 = tpu.matmul %9, %11, %cst {dimension_numbers = #tpu.dot_dimension_numbers<[1], [0], [0], [1], [0, 0, 1, 1], [], []>} : vector<16x32xbf16>, vector<32x512xbf16>, vector<16x512xf32> -> vector<16x512xf32>
    %c0_8 = arith.constant 0 : index
    %c0_9 = arith.constant 0 : index
    %c0_10 = arith.constant 0 : index
    %13 = vector.load %arg12[%c0_8, %c0_9, %c0_10] : memref<1x1x512xf32, #tpu.memory_space<vmem>>, vector<1x1x512xf32>
    %14 = vector.shape_cast %13 : vector<1x1x512xf32> to vector<1x512xf32>
    %15 = vector.broadcast %14 : vector<1x512xf32> to vector<16x512xf32>
    %16 = arith.addf %12, %15 : vector<16x512xf32>
    %cst_11 = arith.constant 0.000000e+00 : f32
    %17 = vector.broadcast %cst_11 : f32 to vector<16x512xf32>
    %18 = arith.maximumf %16, %17 : vector<16x512xf32>
    %c0_12 = arith.constant 0 : index
    %c0_13 = arith.constant 0 : index
    %19 = vector.load %arg20[%c0_12, %c0_13] : memref<16x32xf32, #tpu.memory_space<vmem>>, vector<16x32xf32>
    %20 = arith.truncf %18 : vector<16x512xf32> to vector<16x512xbf16>
    %c0_14 = arith.constant 0 : index
    %c0_15 = arith.constant 0 : index
    %c0_16 = arith.constant 0 : index
    %21 = vector.load %arg13[%c0_14, %c0_15, %c0_16] : memref<1x512x32xbf16, #tpu.memory_space<vmem>>, vector<1x512x32xbf16>
    %22 = vector.shape_cast %21 : vector<1x512x32xbf16> to vector<512x32xbf16>
    %cst_17 = arith.constant dense<0.000000e+00> : vector<16x32xf32>
    %23 = tpu.matmul %20, %22, %cst_17 {dimension_numbers = #tpu.dot_dimension_numbers<[1], [0], [0], [1], [0, 0, 1, 1], [], []>} : vector<16x512xbf16>, vector<512x32xbf16>, vector<16x32xf32> -> vector<16x32xf32>
    %24 = arith.addf %19, %23 : vector<16x32xf32>
    %c0_18 = arith.constant 0 : index
    %c0_19 = arith.constant 0 : index
    %25 = vector.load %arg20[%c0_18, %c0_19] : memref<16x32xf32, #tpu.memory_space<vmem>>, vector<16x32xf32>
    tpu.vector_store %arg20[%c0_18, %c0_19], %24 {strides = array<i32>} : memref<16x32xf32, #tpu.memory_space<vmem>>, vector<16x32xf32>,
    %c3_i32 = arith.constant 3 : i32
    %26 = arith.cmpi eq, %arg1, %c3_i32 : i32
    %27 = arith.extui %26 : i1 to i32
    %c0_i32_20 = arith.constant 0 : i32
    %28 = arith.cmpi ne, %27, %c0_i32_20 : i32
    scf.if %28 {
      %c0_21 = arith.constant 0 : index
      %c0_22 = arith.constant 0 : index
      %29 = vector.load %arg20[%c0_21, %c0_22] : memref<16x32xf32, #tpu.memory_space<vmem>>, vector<16x32xf32>
      %30 = arith.addf %8, %29 : vector<16x32xf32>
      %c0_23 = arith.constant 0 : index
      %c0_24 = arith.constant 0 : index
      %c0_25 = arith.constant 0 : index
      %31 = vector.load %arg14[%c0_23, %c0_24, %c0_25] : memref<1x1x32xf32, #tpu.memory_space<vmem>>, vector<1x1x32xf32>
      %32 = vector.shape_cast %31 : vector<1x1x32xf32> to vector<1x32xf32>
      %33 = vector.broadcast %32 : vector<1x32xf32> to vector<16x32xf32>
      %34 = arith.addf %30, %33 : vector<16x32xf32>
      %c0_26 = arith.constant 0 : index
      %c0_27 = arith.constant 0 : index
      %c0_28 = arith.constant 0 : index
      %35 = vector.load %arg15[%c0_26, %c0_27, %c0_28] : memref<1x1x32xf32, #tpu.memory_space<vmem>>, vector<1x1x32xf32>
      %36 = vector.shape_cast %35 : vector<1x1x32xf32> to vector<1x32xf32>
      %c0_29 = arith.constant 0 : index
      %c0_30 = arith.constant 0 : index
      %c0_31 = arith.constant 0 : index
      %37 = vector.load %arg16[%c0_29, %c0_30, %c0_31] : memref<1x1x32xf32, #tpu.memory_space<vmem>>, vector<1x1x32xf32>
      %38 = vector.shape_cast %37 : vector<1x1x32xf32> to vector<1x32xf32>
      %cst_32 = arith.constant dense<0.000000e+00> : vector<16xf32>
      %39 = vector.multi_reduction <add>, %34, %cst_32 [1] : vector<16x32xf32> to vector<16xf32>
      %40 = vector.shape_cast %39 : vector<16xf32> to vector<16x1xf32>
      %cst_33 = arith.constant 3.200000e+01 : f32
      %41 = vector.broadcast %cst_33 : f32 to vector<16x1xf32>
      %42 = arith.divf %40, %41 : vector<16x1xf32>
      %43 = vector.broadcast %42 : vector<16x1xf32> to vector<16x32xf32>
      %44 = arith.subf %34, %43 : vector<16x32xf32>
      %45 = arith.mulf %44, %44 : vector<16x32xf32>
      %cst_34 = arith.constant dense<0.000000e+00> : vector<16xf32>
      %46 = vector.multi_reduction <add>, %45, %cst_34 [1] : vector<16x32xf32> to vector<16xf32>
      %47 = vector.shape_cast %46 : vector<16xf32> to vector<16x1xf32>
      %cst_35 = arith.constant 3.200000e+01 : f32
      %48 = vector.broadcast %cst_35 : f32 to vector<16x1xf32>
      %49 = arith.divf %47, %48 : vector<16x1xf32>
      %50 = vector.broadcast %42 : vector<16x1xf32> to vector<16x32xf32>
      %51 = arith.subf %34, %50 : vector<16x32xf32>
      %cst_36 = arith.constant 9.99999974E-6 : f32
      %52 = vector.broadcast %cst_36 : f32 to vector<16x1xf32>
      %53 = arith.addf %49, %52 : vector<16x1xf32>
      %54 = math.rsqrt %53 : vector<16x1xf32>
      %55 = vector.broadcast %54 : vector<16x1xf32> to vector<16x32xf32>
      %56 = arith.mulf %51, %55 : vector<16x32xf32>
      %57 = vector.broadcast %36 : vector<1x32xf32> to vector<16x32xf32>
      %58 = arith.mulf %56, %57 : vector<16x32xf32>
      %59 = vector.broadcast %38 : vector<1x32xf32> to vector<16x32xf32>
      %60 = arith.addf %58, %59 : vector<16x32xf32>
      %c0_37 = arith.constant 0 : index
      %c0_38 = arith.constant 0 : index
      %61 = vector.load %arg17[%c0_37, %c0_38] : memref<16x32xf32, #tpu.memory_space<vmem>>, vector<16x32xf32>
      tpu.vector_store %arg17[%c0_37, %c0_38], %60 {strides = array<i32>} : memref<16x32xf32, #tpu.memory_space<vmem>>, vector<16x32xf32>,
    } else {
    }
    return
  }
  func.func @transform_0(%arg0: i32, %arg1: i32) -> (i32, i32) {
    %c0_i32 = arith.constant 0 : i32
    %c0_i32_0 = arith.constant 0 : i32
    %c0_i32_1 = arith.constant 0 : i32
    return %c0_i32, %c0_i32_0 : i32, i32
  }
  func.func @transform_1(%arg0: i32, %arg1: i32) -> (i32, i32) {
    %c0_i32 = arith.constant 0 : i32
    %c0_i32_0 = arith.constant 0 : i32
    %c0_i32_1 = arith.constant 0 : i32
    return %c0_i32, %c0_i32_0 : i32, i32
  }
  func.func @transform_2(%arg0: i32, %arg1: i32) -> (i32, i32) {
    %c0_i32 = arith.constant 0 : i32
    %c0_i32_0 = arith.constant 0 : i32
    %c0_i32_1 = arith.constant 0 : i32
    return %c0_i32, %c0_i32_0 : i32, i32
  }
  func.func @transform_3(%arg0: i32, %arg1: i32) -> (i32, i32, i32) {
    %c0_i32 = arith.constant 0 : i32
    %c0_i32_0 = arith.constant 0 : i32
    %c0_i32_1 = arith.constant 0 : i32
    return %arg0, %c0_i32, %c0_i32_0 : i32, i32, i32
  }
  func.func @transform_4(%arg0: i32, %arg1: i32) -> (i32, i32, i32) {
    %c0_i32 = arith.constant 0 : i32
    %c0_i32_0 = arith.constant 0 : i32
    %c0_i32_1 = arith.constant 0 : i32
    return %arg0, %c0_i32, %c0_i32_0 : i32, i32, i32
  }
  func.func @transform_5(%arg0: i32, %arg1: i32) -> (i32, i32, i32) {
    %c0_i32 = arith.constant 0 : i32
    %c0_i32_0 = arith.constant 0 : i32
    %c0_i32_1 = arith.constant 0 : i32
    return %arg0, %c0_i32, %c0_i32_0 : i32, i32, i32
  }
  func.func @transform_6(%arg0: i32, %arg1: i32) -> (i32, i32, i32) {
    %c0_i32 = arith.constant 0 : i32
    %c0_i32_0 = arith.constant 0 : i32
    %c0_i32_1 = arith.constant 0 : i32
    return %arg0, %c0_i32, %c0_i32_0 : i32, i32, i32
  }
  func.func @transform_7(%arg0: i32, %arg1: i32) -> (i32, i32, i32) {
    %c0_i32 = arith.constant 0 : i32
    %c0_i32_0 = arith.constant 0 : i32
    %c0_i32_1 = arith.constant 0 : i32
    return %arg0, %c0_i32, %c0_i32_0 : i32, i32, i32
  }
  func.func @transform_8(%arg0: i32, %arg1: i32) -> (i32, i32, i32) {
    %c0_i32 = arith.constant 0 : i32
    %c0_i32_0 = arith.constant 0 : i32
    %c0_i32_1 = arith.constant 0 : i32
    return %arg0, %c0_i32, %c0_i32_0 : i32, i32, i32
  }
  func.func @transform_9(%arg0: i32, %arg1: i32) -> (i32, i32, i32) {
    %c0_i32 = arith.constant 0 : i32
    %c0_i32_0 = arith.constant 0 : i32
    return %arg0, %c0_i32, %arg1 : i32, i32, i32
  }
  func.func @transform_10(%arg0: i32, %arg1: i32) -> (i32, i32, i32) {
    %c0_i32 = arith.constant 0 : i32
    %c0_i32_0 = arith.constant 0 : i32
    return %arg0, %c0_i32, %arg1 : i32, i32, i32
  }
  func.func @transform_11(%arg0: i32, %arg1: i32) -> (i32, i32, i32) {
    %c0_i32 = arith.constant 0 : i32
    %c0_i32_0 = arith.constant 0 : i32
    return %arg0, %arg1, %c0_i32 : i32, i32, i32
  }
  func.func @transform_12(%arg0: i32, %arg1: i32) -> (i32, i32, i32) {
    %c0_i32 = arith.constant 0 : i32
    %c0_i32_0 = arith.constant 0 : i32
    %c0_i32_1 = arith.constant 0 : i32
    return %arg0, %c0_i32, %c0_i32_0 : i32, i32, i32
  }
  func.func @transform_13(%arg0: i32, %arg1: i32) -> (i32, i32, i32) {
    %c0_i32 = arith.constant 0 : i32
    %c0_i32_0 = arith.constant 0 : i32
    %c0_i32_1 = arith.constant 0 : i32
    return %arg0, %c0_i32, %c0_i32_0 : i32, i32, i32
  }
  func.func @transform_14(%arg0: i32, %arg1: i32) -> (i32, i32, i32) {
    %c0_i32 = arith.constant 0 : i32
    %c0_i32_0 = arith.constant 0 : i32
    %c0_i32_1 = arith.constant 0 : i32
    return %arg0, %c0_i32, %c0_i32_0 : i32, i32, i32
  }
  func.func @transform_15(%arg0: i32, %arg1: i32) -> (i32, i32) {
    %c0_i32 = arith.constant 0 : i32
    %c0_i32_0 = arith.constant 0 : i32
    %c0_i32_1 = arith.constant 0 : i32
    return %c0_i32, %c0_i32_0 : i32, i32
  }
}

</mosaic_0001>

<llo_original>
// kernel: tpu_custom_call.1
$region0: #{tpu_custom_call.1}
  #allocation0 [shape = 'u32[]', space=smem, size = 0x4, offset = 0x4, fixed_abs, tag = 'smem constant byte address 0x4 - core index']
  #allocation1 [shape = 'u32[72,128]{1,0:T(1,128)}', space=vmem, size = 0x9000, scoped, tag = 'internal scratch']
  #allocation2 [shape = 'f32[2,8,8]{2,1,0:T(8,128)}', space=vmem, size = 0x2000, scoped, tag = 'scratch operand']
  #allocation3 [shape = 'f32[16,32]{1,0:T(8,128)}', space=vmem, size = 0x2000, scoped, tag = 'scratch operand']
  #allocation4 [shape = 'f32[16,32]{1,0:T(8,128)}', space=vmem, size = 0x2000, scoped, tag = 'scratch operand']
  %s0 = inlined_call_operand.hbm [shape: f32[16,32], index: 0, kind: input, shape index: {}, may-alias: {0,15}]
  %s1 = inlined_call_operand.vmem [shape: f32[8,8], index: 1, kind: input, shape index: {}]
  %s2 = inlined_call_operand.vmem [shape: f32[2,8], index: 2, kind: input, shape index: {}]
  %s3 = inlined_call_operand.vmem [shape: bf16[2,32,96], index: 3, kind: input, shape index: {}]
  %s4 = inlined_call_operand.vmem [shape: f32[2,1,96], index: 4, kind: input, shape index: {}]
  %s5 = inlined_call_operand.vmem [shape: bf16[2,32,32], index: 5, kind: input, shape index: {}]
  %s6 = inlined_call_operand.vmem [shape: f32[2,1,32], index: 6, kind: input, shape index: {}]
  %s7 = inlined_call_operand.vmem [shape: f32[2,1,32], index: 7, kind: input, shape index: {}]
  %s8 = inlined_call_operand.vmem [shape: f32[2,1,32], index: 8, kind: input, shape index: {}]
  %s9 = inlined_call_operand.vmem [shape: bf16[2,32,2048], index: 9, kind: input, shape index: {}]
  %s10 = inlined_call_operand.vmem [shape: f32[2,1,2048], index: 10, kind: input, shape index: {}]
  %s11 = inlined_call_operand.vmem [shape: bf16[2,2048,32], index: 11, kind: input, shape index: {}]
  %s12 = inlined_call_operand.vmem [shape: f32[2,1,32], index: 12, kind: input, shape index: {}]
  %s13 = inlined_call_operand.vmem [shape: f32[2,1,32], index: 13, kind: input, shape index: {}]
  %s14 = inlined_call_operand.vmem [shape: f32[2,1,32], index: 14, kind: input, shape index: {}]
  %s15 = inlined_call_operand.hbm [shape: f32[16,32], index: 15, kind: output, shape index: {}, may-alias: {0,15}]
  %s16 = sld [smem:[#allocation0]]
  $region132: #{tpu_custom_call.1} parent=0
    _
  %s18 = ssub.s32 1, %s16
  %s19 = scalar_select 0, %s18, %s16
  $region1: #{tpu_custom_call.1} parent=0
    #allocation5 [shape = 'u8[8192]{0}', space=vmem, size = 0x2000, scoped, tag = 'input window, operand 0, single buffered']
    #allocation6 [shape = 's32[2]{0}', space=sflag, size = 0x8, scoped, tag = 'scoped memory for tpu_custom_call.1']
    #allocation7 [shape = 's32[2]{0}', space=sflag, size = 0x8, scoped, tag = 'scoped memory for tpu_custom_call.1']
    #allocation8 [shape = 'u8[65536]{0}', space=vmem, size = 0x10000, scoped, tag = 'input window, operand 9']
    #allocation9 [shape = 'u8[8192]{0}', space=vmem, size = 0x2000, scoped, tag = 'output window, operand 0, single buffered']
    %20 = vsyncpa [#allocation6], 0
    %21 = vsyncpa [#allocation7], 0
    loop: start=0, step=1, limit=10
    $region2: #{tpu_custom_call.1} parent=1 // loop_pre_header
      _
    $region3: #{tpu_custom_call.1} parent=1 // loop_header
      %s23 = sphi 0, %s27
      %p24 = scmp.ge.s32.totalorder %s23, 10
      %s30 = sphi 0, %s42
      %s31 = sphi 0, %s38
      %s32 = sphi 0, %s30
      %s33 = sphi 0, %s31
      %s34 = sphi 0, %s32
      %s35 = sphi 0, %s33
      %s43 = sphi 0, %s43
      %s45 = sphi 0, %s43
      %s46 = sphi 0, %s45
      %s60 = sphi 0, %s46
      %s64 = sphi 0, %s64
      %s66 = sphi 0, %s64
      %s67 = sphi 0, %s66
      %s81 = sphi 0, %s67
      %s85 = sphi 0, %s85
      %s87 = sphi 0, %s85
      %s88 = sphi 0, %s87
      %s102 = sphi 0, %s88
      %s108 = sphi 0, %s110
      %s111 = sphi 0, %s108
      %s112 = sphi 0, %s111
      %s128 = sphi 0, %s112
      %s134 = sphi 0, %s136
      %s137 = sphi 0, %s134
      %s138 = sphi 0, %s137
      %s154 = sphi 0, %s138
      %s160 = sphi 0, %s162
      %s163 = sphi 0, %s160
      %s164 = sphi 0, %s163
      %s180 = sphi 0, %s164
      %s186 = sphi 0, %s188
      %s189 = sphi 0, %s186
      %s190 = sphi 0, %s189
      %s206 = sphi 0, %s190
      %s212 = sphi 0, %s214
      %s215 = sphi 0, %s212
      %s216 = sphi 0, %s215
      %s232 = sphi 0, %s216
      %s238 = sphi 0, %s240
      %s241 = sphi 0, %s238
      %s242 = sphi 0, %s241
      %s258 = sphi 0, %s242
      %s266 = sphi 0, %s268
      %s269 = sphi 0, %s266
      %s270 = sphi 0, %s269
      %s286 = sphi 0, %s270
      %s294 = sphi 0, %s296
      %s297 = sphi 0, %s294
      %s298 = sphi 0, %s297
      %s314 = sphi 0, %s298
      %s322 = sphi 0, %s324
      %s325 = sphi 0, %s322
      %s326 = sphi 0, %s325
      %s342 = sphi 0, %s326
      %s348 = sphi 0, %s350
      %s351 = sphi 0, %s348
      %s352 = sphi 0, %s351
      %s368 = sphi 0, %s352
      %s374 = sphi 0, %s376
      %s377 = sphi 0, %s374
      %s378 = sphi 0, %s377
      %s394 = sphi 0, %s378
      %s400 = sphi 0, %s402
      %s403 = sphi 0, %s400
      %s404 = sphi 0, %s403
      %s420 = sphi 0, %s404
      %s424 = sphi 0, %s424
      %s426 = sphi 0, %s424
      %s427 = sphi 0, %s426
      %s441 = sphi 0, %s427
    $region4: #{tpu_custom_call.1} parent=1 // loop_header_branch
      %26 = sbr.rel (%p24) target = $region8
    $region5: #{tpu_custom_call.1} parent=1 // loop_body
      %s28 = ssub.s32 %s23, 1
      %s29 = ssub.s32 %s23, 2
      %s36 = sadd.s32 1, %s31
      %p37 = scmp.ge.s32.totalorder %s36, 4
      %s38 = scalar_select %p37, 0, %s36
      %s39 = sadd.s32 1, %s30
      %s40 = scalar_select %p37, %s39, %s30
      %p41 = scmp.ge.s32.totalorder %s40, 2
      %s42 = scalar_select %p41, 0, %s40
      %s44 = sadd.s32 %s43, 1
      %p47 = scmp.eq.s32.totalorder %s23, 7
      %p48 = scmp.ne.s32.totalorder %s43, %s45
      %p49 = scmp.eq.s32.totalorder %s23, 0
      %p50 = por %p48, %p49
      %p51 = scmp.ne.s32.totalorder %s43, %s45
      %p52 = scmp.eq.s32.totalorder %s28, 7
      %p53 = por %p51, %p52
      %p54 = scmp.ne.s32.totalorder %s45, %s46
      %p55 = scmp.eq.s32.totalorder %s28, 0
      %p56 = por %p54, %p55
      %p57 = scmp.ne.s32.totalorder %s45, %s46
      %p58 = scmp.eq.s32.totalorder %s29, 7
      %p59 = por %p57, %p58
      %p61 = scmp.ne.s32.totalorder %s46, %s60
      %p62 = scmp.eq.s32.totalorder %s29, 0
      %p63 = por %p61, %p62
      %s65 = sadd.s32 %s64, 1
      %p68 = scmp.eq.s32.totalorder %s23, 7
      %p69 = scmp.ne.s32.totalorder %s64, %s66
      %p70 = scmp.eq.s32.totalorder %s23, 0
      %p71 = por %p69, %p70
      %p72 = scmp.ne.s32.totalorder %s64, %s66
      %p73 = scmp.eq.s32.totalorder %s28, 7
      %p74 = por %p72, %p73
      %p75 = scmp.ne.s32.totalorder %s66, %s67
      %p76 = scmp.eq.s32.totalorder %s28, 0
      %p77 = por %p75, %p76
      %p78 = scmp.ne.s32.totalorder %s66, %s67
      %p79 = scmp.eq.s32.totalorder %s29, 7
      %p80 = por %p78, %p79
      %p82 = scmp.ne.s32.totalorder %s67, %s81
      %p83 = scmp.eq.s32.totalorder %s29, 0
      %p84 = por %p82, %p83
      %s86 = sadd.s32 %s85, 1
      %p89 = scmp.eq.s32.totalorder %s23, 7
      %p90 = scmp.ne.s32.totalorder %s85, %s87
      %p91 = scmp.eq.s32.totalorder %s23, 0
      %p92 = por %p90, %p91
      %p93 = scmp.ne.s32.totalorder %s85, %s87
      %p94 = scmp.eq.s32.totalorder %s28, 7
      %p95 = por %p93, %p94
      %p96 = scmp.ne.s32.totalorder %s87, %s88
      %p97 = scmp.eq.s32.totalorder %s28, 0
      %p98 = por %p96, %p97
      %p99 = scmp.ne.s32.totalorder %s87, %s88
      %p100 = scmp.eq.s32.totalorder %s29, 7
      %p101 = por %p99, %p100
      %p103 = scmp.ne.s32.totalorder %s88, %s102
      %p104 = scmp.eq.s32.totalorder %s29, 0
      %p105 = por %p103, %p104
      %s106 = ssub.s32 %s30, %s42
      %p107 = scmp.eq.s32.totalorder %s106, 0
      %s109 = sadd.s32 %s108, 1
      %s110 = scalar_select %p107, %s108, %s109
      %p113 = pneg %p107
      %p114 = scmp.eq.s32.totalorder %s23, 7
      %p115 = por %p113, %p114
      %p116 = scmp.ne.s32.totalorder %s108, %s111
      %p117 = scmp.eq.s32.totalorder %s23, 0
      %p118 = por %p116, %p117
      %p119 = scmp.ne.s32.totalorder %s108, %s111
      %p120 = scmp.eq.s32.totalorder %s28, 7
      %p121 = por %p119, %p120
      %p122 = scmp.ne.s32.totalorder %s111, %s112
      %p123 = scmp.eq.s32.totalorder %s28, 0
      %p124 = por %p122, %p123
      %p125 = scmp.ne.s32.totalorder %s111, %s112
      %p126 = scmp.eq.s32.totalorder %s29, 7
      %p127 = por %p125, %p126
      %p129 = scmp.ne.s32.totalorder %s112, %s128
      %p130 = scmp.eq.s32.totalorder %s29, 0
      %p131 = por %p129, %p130
      %s132 = ssub.s32 %s30, %s42
      %p133 = scmp.eq.s32.totalorder %s132, 0
      %s135 = sadd.s32 %s134, 1
      %s136 = scalar_select %p133, %s134, %s135
      %p139 = pneg %p133
      %p140 = scmp.eq.s32.totalorder %s23, 7
      %p141 = por %p139, %p140
      %p142 = scmp.ne.s32.totalorder %s134, %s137
      %p143 = scmp.eq.s32.totalorder %s23, 0
      %p144 = por %p142, %p143
      %p145 = scmp.ne.s32.totalorder %s134, %s137
      %p146 = scmp.eq.s32.totalorder %s28, 7
      %p147 = por %p145, %p146
      %p148 = scmp.ne.s32.totalorder %s137, %s138
      %p149 = scmp.eq.s32.totalorder %s28, 0
      %p150 = por %p148, %p149
      %p151 = scmp.ne.s32.totalorder %s137, %s138
      %p152 = scmp.eq.s32.totalorder %s29, 7
      %p153 = por %p151, %p152
      %p155 = scmp.ne.s32.totalorder %s138, %s154
      %p156 = scmp.eq.s32.totalorder %s29, 0
      %p157 = por %p155, %p156
      %s158 = ssub.s32 %s30, %s42
      %p159 = scmp.eq.s32.totalorder %s158, 0
      %s161 = sadd.s32 %s160, 1
      %s162 = scalar_select %p159, %s160, %s161
      %p165 = pneg %p159
      %p166 = scmp.eq.s32.totalorder %s23, 7
      %p167 = por %p165, %p166
      %p168 = scmp.ne.s32.totalorder %s160, %s163
      %p169 = scmp.eq.s32.totalorder %s23, 0
      %p170 = por %p168, %p169
      %p171 = scmp.ne.s32.totalorder %s160, %s163
      %p172 = scmp.eq.s32.totalorder %s28, 7
      %p173 = por %p171, %p172
      %p174 = scmp.ne.s32.totalorder %s163, %s164
      %p175 = scmp.eq.s32.totalorder %s28, 0
      %p176 = por %p174, %p175
      %p177 = scmp.ne.s32.totalorder %s163, %s164
      %p178 = scmp.eq.s32.totalorder %s29, 7
      %p179 = por %p177, %p178
      %p181 = scmp.ne.s32.totalorder %s164, %s180
      %p182 = scmp.eq.s32.totalorder %s29, 0
      %p183 = por %p181, %p182
      %s184 = ssub.s32 %s30, %s42
      %p185 = scmp.eq.s32.totalorder %s184, 0
      %s187 = sadd.s32 %s186, 1
      %s188 = scalar_select %p185, %s186, %s187
      %p191 = pneg %p185
      %p192 = scmp.eq.s32.totalorder %s23, 7
      %p193 = por %p191, %p192
      %p194 = scmp.ne.s32.totalorder %s186, %s189
      %p195 = scmp.eq.s32.totalorder %s23, 0
      %p196 = por %p194, %p195
      %p197 = scmp.ne.s32.totalorder %s186, %s189
      %p198 = scmp.eq.s32.totalorder %s28, 7
      %p199 = por %p197, %p198
      %p200 = scmp.ne.s32.totalorder %s189, %s190
      %p201 = scmp.eq.s32.totalorder %s28, 0
      %p202 = por %p200, %p201
      %p203 = scmp.ne.s32.totalorder %s189, %s190
      %p204 = scmp.eq.s32.totalorder %s29, 7
      %p205 = por %p203, %p204
      %p207 = scmp.ne.s32.totalorder %s190, %s206
      %p208 = scmp.eq.s32.totalorder %s29, 0
      %p209 = por %p207, %p208
      %s210 = ssub.s32 %s30, %s42
      %p211 = scmp.eq.s32.totalorder %s210, 0
      %s213 = sadd.s32 %s212, 1
      %s214 = scalar_select %p211, %s212, %s213
      %p217 = pneg %p211
      %p218 = scmp.eq.s32.totalorder %s23, 7
      %p219 = por %p217, %p218
      %p220 = scmp.ne.s32.totalorder %s212, %s215
      %p221 = scmp.eq.s32.totalorder %s23, 0
      %p222 = por %p220, %p221
      %p223 = scmp.ne.s32.totalorder %s212, %s215
      %p224 = scmp.eq.s32.totalorder %s28, 7
      %p225 = por %p223, %p224
      %p226 = scmp.ne.s32.totalorder %s215, %s216
      %p227 = scmp.eq.s32.totalorder %s28, 0
      %p228 = por %p226, %p227
      %p229 = scmp.ne.s32.totalorder %s215, %s216
      %p230 = scmp.eq.s32.totalorder %s29, 7
      %p231 = por %p229, %p230
      %p233 = scmp.ne.s32.totalorder %s216, %s232
      %p234 = scmp.eq.s32.totalorder %s29, 0
      %p235 = por %p233, %p234
      %s236 = ssub.s32 %s30, %s42
      %p237 = scmp.eq.s32.totalorder %s236, 0
      %s239 = sadd.s32 %s238, 1
      %s240 = scalar_select %p237, %s238, %s239
      %p243 = pneg %p237
      %p244 = scmp.eq.s32.totalorder %s23, 7
      %p245 = por %p243, %p244
      %p246 = scmp.ne.s32.totalorder %s238, %s241
      %p247 = scmp.eq.s32.totalorder %s23, 0
      %p248 = por %p246, %p247
      %p249 = scmp.ne.s32.totalorder %s238, %s241
      %p250 = scmp.eq.s32.totalorder %s28, 7
      %p251 = por %p249, %p250
      %p252 = scmp.ne.s32.totalorder %s241, %s242
      %p253 = scmp.eq.s32.totalorder %s28, 0
      %p254 = por %p252, %p253
      %p255 = scmp.ne.s32.totalorder %s241, %s242
      %p256 = scmp.eq.s32.totalorder %s29, 7
      %p257 = por %p255, %p256
      %p259 = scmp.ne.s32.totalorder %s242, %s258
      %p260 = scmp.eq.s32.totalorder %s29, 0
      %p261 = por %p259, %p260
      %s262 = ssub.s32 %s30, %s42
      %s263 = ssub.s32 %s31, %s38
      %s264 = sor.u32 %s262, %s263
      %p265 = scmp.eq.s32.totalorder %s264, 0
      %s267 = sadd.s32 %s266, 1
      %s268 = scalar_select %p265, %s266, %s267
      %p271 = pneg %p265
      %p272 = scmp.eq.s32.totalorder %s23, 7
      %p273 = por %p271, %p272
      %p274 = scmp.ne.s32.totalorder %s266, %s269
      %p275 = scmp.eq.s32.totalorder %s23, 0
      %p276 = por %p274, %p275
      %p277 = scmp.ne.s32.totalorder %s266, %s269
      %p278 = scmp.eq.s32.totalorder %s28, 7
      %p279 = por %p277, %p278
      %p280 = scmp.ne.s32.totalorder %s269, %s270
      %p281 = scmp.eq.s32.totalorder %s28, 0
      %p282 = por %p280, %p281
      %p283 = scmp.ne.s32.totalorder %s269, %s270
      %p284 = scmp.eq.s32.totalorder %s29, 7
      %p285 = por %p283, %p284
      %p287 = scmp.ne.s32.totalorder %s270, %s286
      %p288 = scmp.eq.s32.totalorder %s29, 0
      %p289 = por %p287, %p288
      %s290 = ssub.s32 %s30, %s42
      %s291 = ssub.s32 %s31, %s38
      %s292 = sor.u32 %s290, %s291
      %p293 = scmp.eq.s32.totalorder %s292, 0
      %s295 = sadd.s32 %s294, 1
      %s296 = scalar_select %p293, %s294, %s295
      %p299 = pneg %p293
      %p300 = scmp.eq.s32.totalorder %s23, 7
      %p301 = por %p299, %p300
      %p302 = scmp.ne.s32.totalorder %s294, %s297
      %p303 = scmp.eq.s32.totalorder %s23, 0
      %p304 = por %p302, %p303
      %p305 = scmp.ne.s32.totalorder %s294, %s297
      %p306 = scmp.eq.s32.totalorder %s28, 7
      %p307 = por %p305, %p306
      %p308 = scmp.ne.s32.totalorder %s297, %s298
      %p309 = scmp.eq.s32.totalorder %s28, 0
      %p310 = por %p308, %p309
      %p311 = scmp.ne.s32.totalorder %s297, %s298
      %p312 = scmp.eq.s32.totalorder %s29, 7
      %p313 = por %p311, %p312
      %p315 = scmp.ne.s32.totalorder %s298, %s314
      %p316 = scmp.eq.s32.totalorder %s29, 0
      %p317 = por %p315, %p316
      %s318 = ssub.s32 %s30, %s42
      %s319 = ssub.s32 %s31, %s38
      %s320 = sor.u32 %s318, %s319
      %p321 = scmp.eq.s32.totalorder %s320, 0
      %s323 = sadd.s32 %s322, 1
      %s324 = scalar_select %p321, %s322, %s323
      %p327 = pneg %p321
      %p328 = scmp.eq.s32.totalorder %s23, 7
      %p329 = por %p327, %p328
      %p330 = scmp.ne.s32.totalorder %s322, %s325
      %p331 = scmp.eq.s32.totalorder %s23, 0
      %p332 = por %p330, %p331
      %p333 = scmp.ne.s32.totalorder %s322, %s325
      %p334 = scmp.eq.s32.totalorder %s28, 7
      %p335 = por %p333, %p334
      %p336 = scmp.ne.s32.totalorder %s325, %s326
      %p337 = scmp.eq.s32.totalorder %s28, 0
      %p338 = por %p336, %p337
      %p339 = scmp.ne.s32.totalorder %s325, %s326
      %p340 = scmp.eq.s32.totalorder %s29, 7
      %p341 = por %p339, %p340
      %p343 = scmp.ne.s32.totalorder %s326, %s342
      %p344 = scmp.eq.s32.totalorder %s29, 0
      %p345 = por %p343, %p344
      %s346 = ssub.s32 %s30, %s42
      %p347 = scmp.eq.s32.totalorder %s346, 0
      %s349 = sadd.s32 %s348, 1
      %s350 = scalar_select %p347, %s348, %s349
      %p353 = pneg %p347
      %p354 = scmp.eq.s32.totalorder %s23, 7
      %p355 = por %p353, %p354
      %p356 = scmp.ne.s32.totalorder %s348, %s351
      %p357 = scmp.eq.s32.totalorder %s23, 0
      %p358 = por %p356, %p357
      %p359 = scmp.ne.s32.totalorder %s348, %s351
      %p360 = scmp.eq.s32.totalorder %s28, 7
      %p361 = por %p359, %p360
      %p362 = scmp.ne.s32.totalorder %s351, %s352
      %p363 = scmp.eq.s32.totalorder %s28, 0
      %p364 = por %p362, %p363
      %p365 = scmp.ne.s32.totalorder %s351, %s352
      %p366 = scmp.eq.s32.totalorder %s29, 7
      %p367 = por %p365, %p366
      %p369 = scmp.ne.s32.totalorder %s352, %s368
      %p370 = scmp.eq.s32.totalorder %s29, 0
      %p371 = por %p369, %p370
      %s372 = ssub.s32 %s30, %s42
      %p373 = scmp.eq.s32.totalorder %s372, 0
      %s375 = sadd.s32 %s374, 1
      %s376 = scalar_select %p373, %s374, %s375
      %p379 = pneg %p373
      %p380 = scmp.eq.s32.totalorder %s23, 7
      %p381 = por %p379, %p380
      %p382 = scmp.ne.s32.totalorder %s374, %s377
      %p383 = scmp.eq.s32.totalorder %s23, 0
      %p384 = por %p382, %p383
      %p385 = scmp.ne.s32.totalorder %s374, %s377
      %p386 = scmp.eq.s32.totalorder %s28, 7
      %p387 = por %p385, %p386
      %p388 = scmp.ne.s32.totalorder %s377, %s378
      %p389 = scmp.eq.s32.totalorder %s28, 0
      %p390 = por %p388, %p389
      %p391 = scmp.ne.s32.totalorder %s377, %s378
      %p392 = scmp.eq.s32.totalorder %s29, 7
      %p393 = por %p391, %p392
      %p395 = scmp.ne.s32.totalorder %s378, %s394
      %p396 = scmp.eq.s32.totalorder %s29, 0
      %p397 = por %p395, %p396
      %s398 = ssub.s32 %s30, %s42
      %p399 = scmp.eq.s32.totalorder %s398, 0
      %s401 = sadd.s32 %s400, 1
      %s402 = scalar_select %p399, %s400, %s401
      %p405 = pneg %p399
      %p406 = scmp.eq.s32.totalorder %s23, 7
      %p407 = por %p405, %p406
      %p408 = scmp.ne.s32.totalorder %s400, %s403
      %p409 = scmp.eq.s32.totalorder %s23, 0
      %p410 = por %p408, %p409
      %p411 = scmp.ne.s32.totalorder %s400, %s403
      %p412 = scmp.eq.s32.totalorder %s28, 7
      %p413 = por %p411, %p412
      %p414 = scmp.ne.s32.totalorder %s403, %s404
      %p415 = scmp.eq.s32.totalorder %s28, 0
      %p416 = por %p414, %p415
      %p417 = scmp.ne.s32.totalorder %s403, %s404
      %p418 = scmp.eq.s32.totalorder %s29, 7
      %p419 = por %p417, %p418
      %p421 = scmp.ne.s32.totalorder %s404, %s420
      %p422 = scmp.eq.s32.totalorder %s29, 0
      %p423 = por %p421, %p422
      %s425 = sadd.s32 %s424, 1
      %p428 = scmp.eq.s32.totalorder %s23, 7
      %p429 = scmp.ne.s32.totalorder %s424, %s426
      %p430 = scmp.eq.s32.totalorder %s23, 0
      %p431 = por %p429, %p430
      %p432 = scmp.ne.s32.totalorder %s424, %s426
      %p433 = scmp.eq.s32.totalorder %s28, 7
      %p434 = por %p432, %p433
      %p435 = scmp.ne.s32.totalorder %s426, %s427
      %p436 = scmp.eq.s32.totalorder %s28, 0
      %p437 = por %p435, %p436
      %p438 = scmp.ne.s32.totalorder %s426, %s427
      %p439 = scmp.eq.s32.totalorder %s29, 7
      %p440 = por %p438, %p439
      %p442 = scmp.ne.s32.totalorder %s427, %s441
      %p443 = scmp.eq.s32.totalorder %s29, 0
      %p444 = por %p442, %p443
      %p445 = scmp.le.s32.totalorder 1, %s23
      %p446 = scmp.lt.s32.totalorder %s23, 9
      %p447 = pnand %p445, %p446
      %p448 = pneg %p447
      // Predicated region
      $region9: #{tpu_custom_call.1} parent=5 // pred_check
        _
      $region10: #{tpu_custom_call.1} parent=5 // pred_check_branch
        %450 = sbr.rel (%p447) target = $region12
      $region11: #{tpu_custom_call.1} parent=5 // pred_region
        %s451 = ssub.s32 %s23, 1
        // Predicated region
        $region13: #{tpu_custom_call.1} parent=11 // pred_check
          %p452 = pneg %p56
        $region14: #{tpu_custom_call.1} parent=11 // pred_check_branch
          %454 = sbr.rel (%p452) target = $region16
        $region15: #{tpu_custom_call.1} parent=11 // pred_region
          %456 = vsyncadd [#allocation6], 0
          %s457 = sshll.u32 %s0, 4
          %s458 = int_to_ptr.hbm [resolvable:$true] %s457
          %s459 = sshll.u32 [#allocation5], 4
          %s460 = int_to_ptr.vmem [resolvable:$true] %s459
          %465 = dma.hbm_to_vmem [thread:$0]  %s458, 256, %s460, [#allocation6], 128, 128, 8
        $region16: #{tpu_custom_call.1} parent=11 // pred_fallthru
          _
        // Predicated region
        $region17: #{tpu_custom_call.1} parent=11 // pred_check
          %p466 = pneg %p77
        $region18: #{tpu_custom_call.1} parent=11 // pred_check_branch
          %468 = sbr.rel (%p466) target = $region20
        $region19: #{tpu_custom_call.1} parent=11 // pred_region
          _
        $region20: #{tpu_custom_call.1} parent=11 // pred_fallthru
          _
        // Predicated region
        $region21: #{tpu_custom_call.1} parent=11 // pred_check
          %p469 = pneg %p98
        $region22: #{tpu_custom_call.1} parent=11 // pred_check_branch
          %471 = sbr.rel (%p469) target = $region24
        $region23: #{tpu_custom_call.1} parent=11 // pred_region
          _
        $region24: #{tpu_custom_call.1} parent=11 // pred_fallthru
          _
      $region12: #{tpu_custom_call.1} parent=5 // pred_fallthru
        _
      %p472 = scmp.lt.s32.totalorder %s23, 8
      // Predicated region
      $region25: #{tpu_custom_call.1} parent=5 // pred_check
        %p473 = pneg %p472
      $region26: #{tpu_custom_call.1} parent=5 // pred_check_branch
        %475 = sbr.rel (%p473) target = $region28
      $region27: #{tpu_custom_call.1} parent=5 // pred_region
        // Predicated region
        $region29: #{tpu_custom_call.1} parent=27 // pred_check
          %p476 = pneg %p118
        $region30: #{tpu_custom_call.1} parent=27 // pred_check_branch
          %478 = sbr.rel (%p476) target = $region32
        $region31: #{tpu_custom_call.1} parent=27 // pred_region
          %p479 = scmp.lt.s32.totalorder %s30, 1
          %s480 = scalar_select %p479, %s30, 1
          %s481 = smul.addr %s480, 4
          %s482 = smul.addr %s481, 4
          %s483 = scalar_lea.vmem %s3, %s482
        $region32: #{tpu_custom_call.1} parent=27 // pred_fallthru
          _
        // Predicated region
        $region33: #{tpu_custom_call.1} parent=27 // pred_check
          %p484 = pneg %p144
        $region34: #{tpu_custom_call.1} parent=27 // pred_check_branch
          %486 = sbr.rel (%p484) target = $region36
        $region35: #{tpu_custom_call.1} parent=27 // pred_region
          %p487 = scmp.lt.s32.totalorder %s30, 1
          %s488 = scalar_select %p487, %s30, 1
          %s489 = scalar_lea.vmem %s4, %s488
        $region36: #{tpu_custom_call.1} parent=27 // pred_fallthru
          _
        // Predicated region
        $region37: #{tpu_custom_call.1} parent=27 // pred_check
          %p490 = pneg %p170
        $region38: #{tpu_custom_call.1} parent=27 // pred_check_branch
          %492 = sbr.rel (%p490) target = $region40
        $region39: #{tpu_custom_call.1} parent=27 // pred_region
          %p493 = scmp.lt.s32.totalorder %s30, 1
          %s494 = scalar_select %p493, %s30, 1
          %s495 = smul.addr %s494, 4
          %s496 = smul.addr %s495, 4
          %s497 = scalar_lea.vmem %s5, %s496
        $region40: #{tpu_custom_call.1} parent=27 // pred_fallthru
          _
        // Predicated region
        $region41: #{tpu_custom_call.1} parent=27 // pred_check
          %p498 = pneg %p196
        $region42: #{tpu_custom_call.1} parent=27 // pred_check_branch
          %500 = sbr.rel (%p498) target = $region44
        $region43: #{tpu_custom_call.1} parent=27 // pred_region
          %p501 = scmp.lt.s32.totalorder %s30, 1
          %s502 = scalar_select %p501, %s30, 1
          %s503 = scalar_lea.vmem %s6, %s502
        $region44: #{tpu_custom_call.1} parent=27 // pred_fallthru
          _
        // Predicated region
        $region45: #{tpu_custom_call.1} parent=27 // pred_check
          %p504 = pneg %p222
        $region46: #{tpu_custom_call.1} parent=27 // pred_check_branch
          %506 = sbr.rel (%p504) target = $region48
        $region47: #{tpu_custom_call.1} parent=27 // pred_region
          %p507 = scmp.lt.s32.totalorder %s30, 1
          %s508 = scalar_select %p507, %s30, 1
          %s509 = scalar_lea.vmem %s7, %s508
        $region48: #{tpu_custom_call.1} parent=27 // pred_fallthru
          _
        // Predicated region
        $region49: #{tpu_custom_call.1} parent=27 // pred_check
          %p510 = pneg %p248
        $region50: #{tpu_custom_call.1} parent=27 // pred_check_branch
          %512 = sbr.rel (%p510) target = $region52
        $region51: #{tpu_custom_call.1} parent=27 // pred_region
          %p513 = scmp.lt.s32.totalorder %s30, 1
          %s514 = scalar_select %p513, %s30, 1
          %s515 = scalar_lea.vmem %s8, %s514
        $region52: #{tpu_custom_call.1} parent=27 // pred_fallthru
          _
        // Predicated region
        $region53: #{tpu_custom_call.1} parent=27 // pred_check
          %p516 = pneg %p276
        $region54: #{tpu_custom_call.1} parent=27 // pred_check_branch
          %518 = sbr.rel (%p516) target = $region56
        $region55: #{tpu_custom_call.1} parent=27 // pred_region
          %s519 = sand.u32 %s266, 1
          %s520 = sand.u32 %s266, 1
          %s521 = smul.addr %s520, 64
          %s522 = scalar_lea.vmem [#allocation8], %s521
          %s523 = smul.u32 4, %s31
          %s524 = smul.addr %s30, 64
          %s525 = sadd.s32 %s523, %s524
          %s526 = smul.addr %s525, 4
          %s527 = scalar_lea.vmem %s9, %s526
          // Predicated region
          $region57: #{tpu_custom_call.1} parent=55 // pred_check
            _
          $region58: #{tpu_custom_call.1} parent=55 // pred_check_branch
            %529 = sbr.rel (0) target = $region60
          $region59: #{tpu_custom_call.1} parent=55 // pred_region
            // Predicated region
            $region61: #{tpu_custom_call.1} parent=59 // pred_check
              _
            $region62: #{tpu_custom_call.1} parent=59 // pred_check_branch
              %531 = sbr.rel (0) target = $region64
            $region63: #{tpu_custom_call.1} parent=59 // pred_region
              loop: start=0, step=1, limit=1
              $region65: #{tpu_custom_call.1} parent=63 // loop_pre_header
                _
              $region66: #{tpu_custom_call.1} parent=63 // loop_header
                %s533 = sphi 0, %s537
                %p534 = scmp.ge.s32.totalorder %s533, 1
                %s538 = sphi %s527, %s527
                %s539 = sphi %s522, %s522
              $region67: #{tpu_custom_call.1} parent=63 // loop_header_branch
                %536 = sbr.rel (%p534) target = $region71
              $region68: #{tpu_custom_call.1} parent=63 // loop_body
                %v540 = vld [vmem:[%s538] sm:$0xff]
                %541 = vst [vmem:[%s539] sm:$0xff] %v540
                %v542 = vld [vmem:[%s538 + $0x8] sm:$0xff]
                %543 = vst [vmem:[%s539 + $0x8] sm:$0xff] %v542
                %v544 = vld [vmem:[%s538 + $0x40] sm:$0xff]
                %545 = vst [vmem:[%s539 + $0x10] sm:$0xff] %v544
                %v546 = vld [vmem:[%s538 + $0x48] sm:$0xff]
                %547 = vst [vmem:[%s539 + $0x18] sm:$0xff] %v546
                %v548 = vld [vmem:[%s538 + $0x80] sm:$0xff]
                %549 = vst [vmem:[%s539 + $0x20] sm:$0xff] %v548
                %v550 = vld [vmem:[%s538 + $0x88] sm:$0xff]
                %551 = vst [vmem:[%s539 + $0x28] sm:$0xff] %v550
                %v552 = vld [vmem:[%s538 + $0xc0] sm:$0xff]
                %553 = vst [vmem:[%s539 + $0x30] sm:$0xff] %v552
                %v554 = vld [vmem:[%s538 + $0xc8] sm:$0xff]
                %555 = vst [vmem:[%s539 + $0x38] sm:$0xff] %v554
              $region69: #{tpu_custom_call.1} parent=63 // loop_footer
                %s537 = sadd.s32 1, %s533
              $region70: #{tpu_custom_call.1} parent=63 // loop_footer_branch
                %532 = sbr.rel target = $region66
              $region71: #{tpu_custom_call.1} parent=63 // loop_exit
                _
            $region64: #{tpu_custom_call.1} parent=59 // pred_fallthru
              _
            // Predicated region
            $region72: #{tpu_custom_call.1} parent=59 // pred_check
              _
            $region73: #{tpu_custom_call.1} parent=59 // pred_check_branch
              %557 = sbr.rel target = $region75
            $region74: #{tpu_custom_call.1} parent=59 // pred_region
              _
            $region75: #{tpu_custom_call.1} parent=59 // pred_fallthru
              _
          $region60: #{tpu_custom_call.1} parent=55 // pred_fallthru
            _
          %558 = vnop
        $region56: #{tpu_custom_call.1} parent=27 // pred_fallthru
          _
        // Predicated region
        $region76: #{tpu_custom_call.1} parent=27 // pred_check
          %p559 = pneg %p304
        $region77: #{tpu_custom_call.1} parent=27 // pred_check_branch
          %561 = sbr.rel (%p559) target = $region79
        $region78: #{tpu_custom_call.1} parent=27 // pred_region
          %s562 = smul.u32 4, %s31
          %p563 = scmp.lt.s32.totalorder %s30, 1
          %s564 = scalar_select %p563, %s30, 1
          %p565 = scmp.lt.s32.totalorder %s562, 15
          %s566 = scalar_select %p565, %s562, 15
          %s567 = smul.addr %s564, 16
          %s568 = sadd.s32 %s566, %s567
          %s569 = scalar_lea.vmem %s10, %s568
          %s570 = smul.u32 4, %s31
        $region79: #{tpu_custom_call.1} parent=27 // pred_fallthru
          _
        // Predicated region
        $region80: #{tpu_custom_call.1} parent=27 // pred_check
          %p571 = pneg %p332
        $region81: #{tpu_custom_call.1} parent=27 // pred_check_branch
          %573 = sbr.rel (%p571) target = $region83
        $region82: #{tpu_custom_call.1} parent=27 // pred_region
          %s574 = smul.u32 64, %s31
          %p575 = scmp.lt.s32.totalorder %s30, 1
          %s576 = scalar_select %p575, %s30, 1
          %p577 = scmp.lt.s32.totalorder %s574, 255
          %s578 = scalar_select %p577, %s574, 255
          %s579 = smul.addr %s576, 256
          %s580 = sadd.s32 %s578, %s579
          %s581 = smul.addr %s580, 4
          %s582 = scalar_lea.vmem %s11, %s581
          %s583 = smul.u32 64, %s31
        $region83: #{tpu_custom_call.1} parent=27 // pred_fallthru
          _
        // Predicated region
        $region84: #{tpu_custom_call.1} parent=27 // pred_check
          %p584 = pneg %p358
        $region85: #{tpu_custom_call.1} parent=27 // pred_check_branch
          %586 = sbr.rel (%p584) target = $region87
        $region86: #{tpu_custom_call.1} parent=27 // pred_region
          %p587 = scmp.lt.s32.totalorder %s30, 1
          %s588 = scalar_select %p587, %s30, 1
          %s589 = scalar_lea.vmem %s12, %s588
        $region87: #{tpu_custom_call.1} parent=27 // pred_fallthru
          _
        // Predicated region
        $region88: #{tpu_custom_call.1} parent=27 // pred_check
          %p590 = pneg %p384
        $region89: #{tpu_custom_call.1} parent=27 // pred_check_branch
          %592 = sbr.rel (%p590) target = $region91
        $region90: #{tpu_custom_call.1} parent=27 // pred_region
          %p593 = scmp.lt.s32.totalorder %s30, 1
          %s594 = scalar_select %p593, %s30, 1
          %s595 = scalar_lea.vmem %s13, %s594
        $region91: #{tpu_custom_call.1} parent=27 // pred_fallthru
          _
        // Predicated region
        $region92: #{tpu_custom_call.1} parent=27 // pred_check
          %p596 = pneg %p410
        $region93: #{tpu_custom_call.1} parent=27 // pred_check_branch
          %598 = sbr.rel (%p596) target = $region95
        $region94: #{tpu_custom_call.1} parent=27 // pred_region
          %p599 = scmp.lt.s32.totalorder %s30, 1
          %s600 = scalar_select %p599, %s30, 1
          %s601 = scalar_lea.vmem %s14, %s600
        $region95: #{tpu_custom_call.1} parent=27 // pred_fallthru
          _
      $region28: #{tpu_custom_call.1} parent=5 // pred_fallthru
        _
      %p602 = scmp.le.s32.totalorder 1, %s23
      %p603 = scmp.lt.s32.totalorder %s23, 9
      %p604 = pnand %p602, %p603
      %p605 = pneg %p604
      // Predicated region
      $region96: #{tpu_custom_call.1} parent=5 // pred_check
        _
      $region97: #{tpu_custom_call.1} parent=5 // pred_check_branch
        %607 = sbr.rel (%p604) target = $region99
      $region98: #{tpu_custom_call.1} parent=5 // pred_region
        %s608 = ssub.s32 %s23, 1
        // Predicated region
        $region100: #{tpu_custom_call.1} parent=98 // pred_check
          %p609 = pneg %p56
        $region101: #{tpu_custom_call.1} parent=98 // pred_check_branch
          %611 = sbr.rel (%p609) target = $region103
        $region102: #{tpu_custom_call.1} parent=98 // pred_region
          %613 = dma.done [#allocation6], 256
        $region103: #{tpu_custom_call.1} parent=98 // pred_fallthru
          _
        %s614 = sand.u32 %s269, 1
        %s615 = sand.u32 %s269, 1
        %s616 = smul.addr %s615, 64
        %s617 = scalar_lea.vmem [#allocation8], %s616
        // Predicated region
        $region104: #{tpu_custom_call.1} parent=98 // pred_check
          %p618 = pneg %p282
        $region105: #{tpu_custom_call.1} parent=98 // pred_check_branch
          %620 = sbr.rel (%p618) target = $region107
        $region106: #{tpu_custom_call.1} parent=98 // pred_region
          _
        $region107: #{tpu_custom_call.1} parent=98 // pred_fallthru
          _
        %p621 = pneg %p56
        %p622 = pneg %p53
        %p623 = pneg %p77
        %p624 = pneg %p74
        %p625 = pneg %p98
        %p626 = pneg %p95
        %p627 = scmp.lt.s32.totalorder %s32, 1
        %s628 = scalar_select %p627, %s32, 1
        %s629 = smul.addr %s628, 4
        %s630 = smul.addr %s629, 4
        %s631 = scalar_lea.vmem %s3, %s630
        %p632 = pneg %p124
        %p633 = pneg %p121
        %p634 = scmp.lt.s32.totalorder %s32, 1
        %s635 = scalar_select %p634, %s32, 1
        %s636 = scalar_lea.vmem %s4, %s635
        %p637 = pneg %p150
        %p638 = pneg %p147
        %p639 = scmp.lt.s32.totalorder %s32, 1
        %s640 = scalar_select %p639, %s32, 1
        %s641 = smul.addr %s640, 4
        %s642 = smul.addr %s641, 4
        %s643 = scalar_lea.vmem %s5, %s642
        %p644 = pneg %p176
        %p645 = pneg %p173
        %p646 = scmp.lt.s32.totalorder %s32, 1
        %s647 = scalar_select %p646, %s32, 1
        %s648 = scalar_lea.vmem %s6, %s647
        %p649 = pneg %p202
        %p650 = pneg %p199
        %p651 = scmp.lt.s32.totalorder %s32, 1
        %s652 = scalar_select %p651, %s32, 1
        %s653 = scalar_lea.vmem %s7, %s652
        %p654 = pneg %p228
        %p655 = pneg %p225
        %p656 = scmp.lt.s32.totalorder %s32, 1
        %s657 = scalar_select %p656, %s32, 1
        %s658 = scalar_lea.vmem %s8, %s657
        %p659 = pneg %p254
        %p660 = pneg %p251
        %s661 = sand.u32 %s269, 1
        %s662 = sand.u32 %s269, 1
        %s663 = smul.addr %s662, 64
        %s664 = scalar_lea.vmem [#allocation8], %s663
        %p665 = pneg %p282
        %p666 = pneg %p279
        %s667 = smul.u32 4, %s33
        %p668 = scmp.lt.s32.totalorder %s32, 1
        %s669 = scalar_select %p668, %s32, 1
        %p670 = scmp.lt.s32.totalorder %s667, 15
        %s671 = scalar_select %p670, %s667, 15
        %s672 = smul.addr %s669, 16
        %s673 = sadd.s32 %s671, %s672
        %s674 = scalar_lea.vmem %s10, %s673
        %p675 = pneg %p310
        %p676 = pneg %p307
        %s677 = smul.u32 64, %s33
        %p678 = scmp.lt.s32.totalorder %s32, 1
        %s679 = scalar_select %p678, %s32, 1
        %p680 = scmp.lt.s32.totalorder %s677, 255
        %s681 = scalar_select %p680, %s677, 255
        %s682 = smul.addr %s679, 256
        %s683 = sadd.s32 %s681, %s682
        %s684 = smul.addr %s683, 4
        %s685 = scalar_lea.vmem %s11, %s684
        %p686 = pneg %p338
        %p687 = pneg %p335
        %p688 = scmp.lt.s32.totalorder %s32, 1
        %s689 = scalar_select %p688, %s32, 1
        %s690 = scalar_lea.vmem %s12, %s689
        %p691 = pneg %p364
        %p692 = pneg %p361
        %p693 = scmp.lt.s32.totalorder %s32, 1
        %s694 = scalar_select %p693, %s32, 1
        %s695 = scalar_lea.vmem %s13, %s694
        %p696 = pneg %p390
        %p697 = pneg %p387
        %p698 = scmp.lt.s32.totalorder %s32, 1
        %s699 = scalar_select %p698, %s32, 1
        %s700 = scalar_lea.vmem %s14, %s699
        %p701 = pneg %p416
        %p702 = pneg %p413
        %p703 = pneg %p437
        %p704 = pneg %p434
        %p705 = scmp.lt.s32.totalorder %s32, 1
        %s706 = scalar_select %p705, %s32, 1
        %s707 = smul.addr %s706, 4
        %s708 = smul.addr %s707, 4
        %s709 = scalar_lea.vmem %s3, %s708
        %p710 = scmp.lt.s32.totalorder %s32, 1
        %s711 = scalar_select %p710, %s32, 1
        %s712 = scalar_lea.vmem %s4, %s711
        %p713 = scmp.lt.s32.totalorder %s32, 1
        %s714 = scalar_select %p713, %s32, 1
        %s715 = smul.addr %s714, 4
        %s716 = smul.addr %s715, 4
        %s717 = scalar_lea.vmem %s5, %s716
        %p718 = scmp.lt.s32.totalorder %s32, 1
        %s719 = scalar_select %p718, %s32, 1
        %s720 = scalar_lea.vmem %s6, %s719
        %p721 = scmp.lt.s32.totalorder %s32, 1
        %s722 = scalar_select %p721, %s32, 1
        %s723 = scalar_lea.vmem %s7, %s722
        %p724 = scmp.lt.s32.totalorder %s32, 1
        %s725 = scalar_select %p724, %s32, 1
        %s726 = scalar_lea.vmem %s8, %s725
        %s727 = smul.u32 4, %s33
        %s728 = smul.u32 4, %s33
        %p729 = scmp.lt.s32.totalorder %s32, 1
        %s730 = scalar_select %p729, %s32, 1
        %p731 = scmp.lt.s32.totalorder %s728, 15
        %s732 = scalar_select %p731, %s728, 15
        %s733 = smul.addr %s730, 16
        %s734 = sadd.s32 %s732, %s733
        %s735 = scalar_lea.vmem %s10, %s734
        %s736 = smul.u32 4, %s33
        %s737 = smul.u32 64, %s33
        %p738 = scmp.lt.s32.totalorder %s32, 1
        %s739 = scalar_select %p738, %s32, 1
        %p740 = scmp.lt.s32.totalorder %s737, 255
        %s741 = scalar_select %p740, %s737, 255
        %s742 = smul.addr %s739, 256
        %s743 = sadd.s32 %s741, %s742
        %s744 = smul.addr %s743, 4
        %s745 = scalar_lea.vmem %s11, %s744
        %s746 = smul.u32 64, %s33
        %p747 = scmp.lt.s32.totalorder %s32, 1
        %s748 = scalar_select %p747, %s32, 1
        %s749 = scalar_lea.vmem %s12, %s748
        %p750 = scmp.lt.s32.totalorder %s32, 1
        %s751 = scalar_select %p750, %s32, 1
        %s752 = scalar_lea.vmem %s13, %s751
        %p753 = scmp.lt.s32.totalorder %s32, 1
        %s754 = scalar_select %p753, %s32, 1
        %s755 = scalar_lea.vmem %s14, %s754
        %p757 = scmp.eq.s32.totalorder %s32, 0
        %p758 = scmp.eq.s32.totalorder %s33, 0
        %p759 = pnand %p757, %p758
        %p760 = pneg %p759
        // Predicated region
        $region108: #{tpu_custom_call.1} parent=98 // pred_check
          _
        $region109: #{tpu_custom_call.1} parent=98 // pred_check_branch
          %762 = sbr.rel (%p759) target = $region111
        $region110: #{tpu_custom_call.1} parent=98 // pred_region
          %v763 = vld [vmem:[#allocation5] sm:$0xff]
          %v764 = vld [vmem:[#allocation5 + $0x8] sm:$0xff]
          %vm765 = vcmask 261120
          %766 = vst.msk [vmem:[#allocation9] sm:$0xff] %vm765, %v763
          %767 = vst.msk [vmem:[#allocation9 + $0x8] sm:$0xff] %vm765, %v764
          %v768 = vld [vmem:[%s1] sm:$0xff]
          %v769 = vld [vmem:[%s2] sm:$0x3]
          %v771 = vrot.slane %v769, 1
          %v772 = vperm.slane %v769, 0
          %v773 = vperm.slane %v771, 0
          %v776 = vadd.f32 %v768, %v772
          %v777 = vadd.f32 %v768, %v773
          %vm778 = vcmask 64512
          %779 = vst.msk [vmem:[#allocation2] sm:$0xff] %vm778, %v776
          %780 = vst.msk [vmem:[#allocation2 + $0x8] sm:$0xff] %vm778, %v777
        $region111: #{tpu_custom_call.1} parent=98 // pred_fallthru
          _
        // Predicated region
        $region112: #{tpu_custom_call.1} parent=98 // pred_check
          %p781 = pneg %p758
        $region113: #{tpu_custom_call.1} parent=98 // pred_check_branch
          %783 = sbr.rel (%p781) target = $region115
        $region114: #{tpu_custom_call.1} parent=98 // pred_region
          %v784 = vld [vmem:[#allocation9] sm:$0xff]
          %v785 = vld [vmem:[#allocation9 + $0x8] sm:$0xff]
          %v786 = vpack.c.bf16 %v785, %v784
          %v787 = vld [vmem:[%s709] sm:$0xf]
          %v788 = vld [vmem:[%s709 + $0x4] sm:$0xf]
          %v789 = vld [vmem:[%s709 + $0x8] sm:$0xf]
          %v790 = vld [vmem:[%s709 + $0xc] sm:$0xf]
          %v791 = vld [vmem:[%s712] sm:$0x1]
          %v793 = vperm.slane %v791, 0
          %v799 = vunpack.c.l.b16 %v787
          %v800 = vunpack.c.l.b16 %v788
          %v801 = vunpack.c.l.b16 %v789
          %v802 = vunpack.c.l.b16 %v790
          %v803 = vpack.c.b16 %v800, %v799
          %v804 = vpack.c.b16 %v802, %v801
          %vm807 = vcmask 261120
          %v809 = vsel %vm807, %v786, 0
          %811 = vmatpush.bf16.msra.mxu0 0
          %812 = vmatpush.bf16.msra.mxu0 0
          %813 = vmatpush.bf16.msra.mxu0 0
          %814 = vmatpush.bf16.msra.mxu0 0
          %815 = vmatpush.bf16.msra.mxu0 0
          %816 = vmatpush.bf16.msra.mxu0 0
          %817 = vmatpush.bf16.msra.mxu0 %v804
          %818 = vmatpush.bf16.msra.mxu0 %v803
          %819 = vmatmul.bf16.gmra.mxu0 %v809
          %v820 = vpop.f32.mrf.mxu0
          %v821 = vadd.f32 %v793, %v820
          %v822 = vpop.f32.mrf.mxu0
          %v823 = vadd.f32 %v793, %v822
          %824 = vdwg.mxu0
          %v825 = vld [vmem:[#allocation2] sm:$0xff]
          %v826 = vld [vmem:[#allocation2 + $0x8] sm:$0xff]
          %v827 = vpack.c.bf16 %v821, %v821
          %v828 = vpack.c.bf16 %v823, %v823
          %v830 = vunpack.c.l.b16 %v827
          %v831 = vpack.c.b16 %v830, %v830
          %832 = vrot.lane.b32.xlu0 %v831, 96
          %v833 = vpop.permute.xlu0 %832
          %vm834 = vcmask 64512
          %v836 = vsel %vm834, %v827, 0
          %v839 = vsel %vm834, %v833, 0
          %841 = vmatpush.bf16.xpose.msra.mxu0 0
          %842 = vmatpush.bf16.xpose.msra.mxu0 0
          %843 = vmatpush.bf16.xpose.msra.mxu0 0
          %844 = vmatpush.bf16.xpose.msra.mxu0 0
          %845 = vmatpush.bf16.xpose.msra.mxu0 0
          %846 = vmatpush.bf16.xpose.msra.mxu0 0
          %847 = vmatpush.bf16.xpose.msra.mxu0 0
          %848 = vmatpush.bf16.xpose.msra.mxu0 %v839
          %849 = vmatmul.bf16.gmra.mxu0 %v836
          %v850 = vpop.f32.mrf.mxu0
          %v851 = vadd.f32 %v825, %v850
          %v852 = vpop.f32.mrf.mxu0
          %853 = vdwg.mxu0
          %v855 = vunpack.c.l.b16 %v828
          %v856 = vpack.c.b16 %v855, %v855
          %857 = vrot.lane.b32.xlu0 %v856, 96
          %v858 = vpop.permute.xlu0 %857
          %v860 = vsel %vm834, %v828, 0
          %v863 = vsel %vm834, %v858, 0
          %865 = vmatpush.bf16.xpose.msra.mxu0 0
          %866 = vmatpush.bf16.xpose.msra.mxu0 0
          %867 = vmatpush.bf16.xpose.msra.mxu0 0
          %868 = vmatpush.bf16.xpose.msra.mxu0 0
          %869 = vmatpush.bf16.xpose.msra.mxu0 0
          %870 = vmatpush.bf16.xpose.msra.mxu0 0
          %871 = vmatpush.bf16.xpose.msra.mxu0 0
          %872 = vmatpush.bf16.xpose.msra.mxu0 %v863
          %873 = vmatmul.bf16.gmra.mxu0 %v860
          %v874 = vpop.f32.mrf.mxu0
          %v875 = vadd.f32 %v826, %v874
          %v876 = vpop.f32.mrf.mxu0
          %877 = vdwg.mxu0
          %v878 = vsel %vm834, %v851, -inf
          %879 = vmax.xlane.f32.xlu0 %v878
          %v880 = vpop.xlane.xlu0 %879
          %v881 = vsel %vm834, %v875, -inf
          %882 = vmax.xlane.f32.xlu0 %v881
          %v883 = vpop.xlane.xlu0 %882
          %v884 = vsub.f32 %v851, %v880
          %v885 = vsub.f32 %v875, %v883
          %v886 = vmul.f32 %v884, 1.442695
          %v887 = vpow.pop %v886
          %v888 = vmul.f32 %v885, 1.442695
          %v889 = vpow.pop %v888
          %v890 = vsel %vm834, %v887, 0.0
          %891 = vadd.xlane.f32.xlu0 %v890
          %v892 = vpop.xlane.xlu0 %891
          %v893 = vsel %vm834, %v889, 0.0
          %894 = vadd.xlane.f32.xlu0 %v893
          %v895 = vpop.xlane.xlu0 %894
          %v896 = vrcp.pop %v892
          %v897 = vrcp.pop %v895
          %v898 = vmul.f32 %v887, %v896
          %v899 = vmul.f32 %v889, %v897
          %v900 = vpack.c.bf16 %v898, %v898
          %v901 = vpack.c.bf16 %v899, %v899
          %902 = vrot.lane.b32.xlu0 %v831, 64
          %v903 = vpop.permute.xlu0 %902
          %v905 = vsel %vm834, %v900, 0
          %vm907 = vcmask 1043456
          %v909 = vsel %vm907, %v903, 0
          %911 = vmatpush.bf16.msra.mxu0 0
          %912 = vmatpush.bf16.msra.mxu0 0
          %913 = vmatpush.bf16.msra.mxu0 0
          %914 = vmatpush.bf16.msra.mxu0 0
          %915 = vmatpush.bf16.msra.mxu0 0
          %916 = vmatpush.bf16.msra.mxu0 0
          %917 = vmatpush.bf16.msra.mxu0 0
          %918 = vmatpush.bf16.msra.mxu0 %v909
          %919 = vmatmul.bf16.gmra.mxu0 %v905
          %v920 = vpop.f32.mrf.mxu0
          %v921 = vadd.f32 0.0, %v920
          %v922 = vpop.f32.mrf.mxu0
          %923 = vdwg.mxu0
          %924 = vrot.lane.b32.xlu0 %v856, 64
          %v925 = vpop.permute.xlu0 %924
          %v927 = vsel %vm834, %v901, 0
          %v930 = vsel %vm907, %v925, 0
          %932 = vmatpush.bf16.msra.mxu0 0
          %933 = vmatpush.bf16.msra.mxu0 0
          %934 = vmatpush.bf16.msra.mxu0 0
          %935 = vmatpush.bf16.msra.mxu0 0
          %936 = vmatpush.bf16.msra.mxu0 0
          %937 = vmatpush.bf16.msra.mxu0 0
          %938 = vmatpush.bf16.msra.mxu0 0
          %939 = vmatpush.bf16.msra.mxu0 %v930
          %940 = vmatmul.bf16.gmra.mxu0 %v927
          %v941 = vpop.f32.mrf.mxu0
          %v942 = vadd.f32 0.0, %v941
          %v943 = vpop.f32.mrf.mxu0
          %944 = vdwg.mxu0
          %945 = vrot.lane.b32.xlu0 %v831, 120
          %v946 = vpop.permute.xlu0 %945
          %947 = vrot.lane.b32.xlu0 %v831, 88
          %v948 = vpop.permute.xlu0 %947
          %v950 = vsel %vm834, %v946, 0
          %v953 = vsel %vm834, %v948, 0
          %955 = vmatpush.bf16.xpose.msra.mxu0 0
          %956 = vmatpush.bf16.xpose.msra.mxu0 0
          %957 = vmatpush.bf16.xpose.msra.mxu0 0
          %958 = vmatpush.bf16.xpose.msra.mxu0 0
          %959 = vmatpush.bf16.xpose.msra.mxu0 0
          %960 = vmatpush.bf16.xpose.msra.mxu0 0
          %961 = vmatpush.bf16.xpose.msra.mxu0 0
          %962 = vmatpush.bf16.xpose.msra.mxu0 %v953
          %963 = vmatmul.bf16.gmra.mxu0 %v950
          %v964 = vpop.f32.mrf.mxu0
          %v965 = vadd.f32 %v825, %v964
          %v966 = vpop.f32.mrf.mxu0
          %967 = vdwg.mxu0
          %968 = vrot.lane.b32.xlu0 %v856, 120
          %v969 = vpop.permute.xlu0 %968
          %970 = vrot.lane.b32.xlu0 %v856, 88
          %v971 = vpop.permute.xlu0 %970
          %v973 = vsel %vm834, %v969, 0
          %v976 = vsel %vm834, %v971, 0
          %978 = vmatpush.bf16.xpose.msra.mxu0 0
          %979 = vmatpush.bf16.xpose.msra.mxu0 0
          %980 = vmatpush.bf16.xpose.msra.mxu0 0
          %981 = vmatpush.bf16.xpose.msra.mxu0 0
          %982 = vmatpush.bf16.xpose.msra.mxu0 0
          %983 = vmatpush.bf16.xpose.msra.mxu0 0
          %984 = vmatpush.bf16.xpose.msra.mxu0 0
          %985 = vmatpush.bf16.xpose.msra.mxu0 %v976
          %986 = vmatmul.bf16.gmra.mxu0 %v973
          %v987 = vpop.f32.mrf.mxu0
          %v988 = vadd.f32 %v826, %v987
          %v989 = vpop.f32.mrf.mxu0
          %990 = vdwg.mxu0
          %v991 = vsel %vm834, %v965, -inf
          %992 = vmax.xlane.f32.xlu0 %v991
          %v993 = vpop.xlane.xlu0 %992
          %v994 = vsel %vm834, %v988, -inf
          %995 = vmax.xlane.f32.xlu0 %v994
          %v996 = vpop.xlane.xlu0 %995
          %v997 = vsub.f32 %v965, %v993
          %v998 = vsub.f32 %v988, %v996
          %v999 = vmul.f32 %v997, 1.442695
          %v1000 = vpow.pop %v999
          %v1001 = vmul.f32 %v998, 1.442695
          %v1002 = vpow.pop %v1001
          %v1003 = vsel %vm834, %v1000, 0.0
          %1004 = vadd.xlane.f32.xlu0 %v1003
          %v1005 = vpop.xlane.xlu0 %1004
          %v1006 = vsel %vm834, %v1002, 0.0
          %1007 = vadd.xlane.f32.xlu0 %v1006
          %v1008 = vpop.xlane.xlu0 %1007
          %v1009 = vrcp.pop %v1005
          %v1010 = vrcp.pop %v1008
          %v1011 = vmul.f32 %v1000, %v1009
          %v1012 = vmul.f32 %v1002, %v1010
          %v1013 = vpack.c.bf16 %v1011, %v1011
          %v1014 = vpack.c.bf16 %v1012, %v1012
          %1015 = vrot.lane.b32.xlu0 %v831, 56
          %v1016 = vpop.permute.xlu0 %1015
          %v1018 = vsel %vm834, %v1013, 0
          %v1021 = vsel %vm907, %v1016, 0
          %1023 = vmatpush.bf16.msra.mxu0 0
          %1024 = vmatpush.bf16.msra.mxu0 0
          %1025 = vmatpush.bf16.msra.mxu0 0
          %1026 = vmatpush.bf16.msra.mxu0 0
          %1027 = vmatpush.bf16.msra.mxu0 0
          %1028 = vmatpush.bf16.msra.mxu0 0
          %1029 = vmatpush.bf16.msra.mxu0 0
          %1030 = vmatpush.bf16.msra.mxu0 %v1021
          %1031 = vmatmul.bf16.gmra.mxu0 %v1018
          %v1032 = vpop.f32.mrf.mxu0
          %v1033 = vadd.f32 0.0, %v1032
          %v1034 = vpop.f32.mrf.mxu0
          %1035 = vdwg.mxu0
          %1036 = vrot.lane.b32.xlu0 %v856, 56
          %v1037 = vpop.permute.xlu0 %1036
          %v1039 = vsel %vm834, %v1014, 0
          %v1042 = vsel %vm907, %v1037, 0
          %1044 = vmatpush.bf16.msra.mxu0 0
          %1045 = vmatpush.bf16.msra.mxu0 0
          %1046 = vmatpush.bf16.msra.mxu0 0
          %1047 = vmatpush.bf16.msra.mxu0 0
          %1048 = vmatpush.bf16.msra.mxu0 0
          %1049 = vmatpush.bf16.msra.mxu0 0
          %1050 = vmatpush.bf16.msra.mxu0 0
          %1051 = vmatpush.bf16.msra.mxu0 %v1042
          %1052 = vmatmul.bf16.gmra.mxu0 %v1039
          %v1053 = vpop.f32.mrf.mxu0
          %v1054 = vadd.f32 0.0, %v1053
          %v1055 = vpop.f32.mrf.mxu0
          %1056 = vdwg.mxu0
          %1057 = vrot.lane.b32.xlu0 %v831, 112
          %v1058 = vpop.permute.xlu0 %1057
          %1059 = vrot.lane.b32.xlu0 %v831, 80
          %v1060 = vpop.permute.xlu0 %1059
          %v1062 = vsel %vm834, %v1058, 0
          %v1065 = vsel %vm834, %v1060, 0
          %1067 = vmatpush.bf16.xpose.msra.mxu0 0
          %1068 = vmatpush.bf16.xpose.msra.mxu0 0
          %1069 = vmatpush.bf16.xpose.msra.mxu0 0
          %1070 = vmatpush.bf16.xpose.msra.mxu0 0
          %1071 = vmatpush.bf16.xpose.msra.mxu0 0
          %1072 = vmatpush.bf16.xpose.msra.mxu0 0
          %1073 = vmatpush.bf16.xpose.msra.mxu0 0
          %1074 = vmatpush.bf16.xpose.msra.mxu0 %v1065
          %1075 = vmatmul.bf16.gmra.mxu0 %v1062
          %v1076 = vpop.f32.mrf.mxu0
          %v1077 = vadd.f32 %v825, %v1076
          %v1078 = vpop.f32.mrf.mxu0
          %1079 = vdwg.mxu0
          %1080 = vrot.lane.b32.xlu0 %v856, 112
          %v1081 = vpop.permute.xlu0 %1080
          %1082 = vrot.lane.b32.xlu0 %v856, 80
          %v1083 = vpop.permute.xlu0 %1082
          %v1085 = vsel %vm834, %v1081, 0
          %v1088 = vsel %vm834, %v1083, 0
          %1090 = vmatpush.bf16.xpose.msra.mxu0 0
          %1091 = vmatpush.bf16.xpose.msra.mxu0 0
          %1092 = vmatpush.bf16.xpose.msra.mxu0 0
          %1093 = vmatpush.bf16.xpose.msra.mxu0 0
          %1094 = vmatpush.bf16.xpose.msra.mxu0 0
          %1095 = vmatpush.bf16.xpose.msra.mxu0 0
          %1096 = vmatpush.bf16.xpose.msra.mxu0 0
          %1097 = vmatpush.bf16.xpose.msra.mxu0 %v1088
          %1098 = vmatmul.bf16.gmra.mxu0 %v1085
          %v1099 = vpop.f32.mrf.mxu0
          %v1100 = vadd.f32 %v826, %v1099
          %v1101 = vpop.f32.mrf.mxu0
          %1102 = vdwg.mxu0
          %v1103 = vsel %vm834, %v1077, -inf
          %1104 = vmax.xlane.f32.xlu0 %v1103
          %v1105 = vpop.xlane.xlu0 %1104
          %v1106 = vsel %vm834, %v1100, -inf
          %1107 = vmax.xlane.f32.xlu0 %v1106
          %v1108 = vpop.xlane.xlu0 %1107
          %v1109 = vsub.f32 %v1077, %v1105
          %v1110 = vsub.f32 %v1100, %v1108
          %v1111 = vmul.f32 %v1109, 1.442695
          %v1112 = vpow.pop %v1111
          %v1113 = vmul.f32 %v1110, 1.442695
          %v1114 = vpow.pop %v1113
          %v1115 = vsel %vm834, %v1112, 0.0
          %1116 = vadd.xlane.f32.xlu0 %v1115
          %v1117 = vpop.xlane.xlu0 %1116
          %v1118 = vsel %vm834, %v1114, 0.0
          %1119 = vadd.xlane.f32.xlu0 %v1118
          %v1120 = vpop.xlane.xlu0 %1119
          %v1121 = vrcp.pop %v1117
          %v1122 = vrcp.pop %v1120
          %v1123 = vmul.f32 %v1112, %v1121
          %v1124 = vmul.f32 %v1114, %v1122
          %v1125 = vpack.c.bf16 %v1123, %v1123
          %v1126 = vpack.c.bf16 %v1124, %v1124
          %1127 = vrot.lane.b32.xlu0 %v831, 48
          %v1128 = vpop.permute.xlu0 %1127
          %v1130 = vsel %vm834, %v1125, 0
          %v1133 = vsel %vm907, %v1128, 0
          %1135 = vmatpush.bf16.msra.mxu0 0
          %1136 = vmatpush.bf16.msra.mxu0 0
          %1137 = vmatpush.bf16.msra.mxu0 0
          %1138 = vmatpush.bf16.msra.mxu0 0
          %1139 = vmatpush.bf16.msra.mxu0 0
          %1140 = vmatpush.bf16.msra.mxu0 0
          %1141 = vmatpush.bf16.msra.mxu0 0
          %1142 = vmatpush.bf16.msra.mxu0 %v1133
          %1143 = vmatmul.bf16.gmra.mxu0 %v1130
          %v1144 = vpop.f32.mrf.mxu0
          %v1145 = vadd.f32 0.0, %v1144
          %v1146 = vpop.f32.mrf.mxu0
          %1147 = vdwg.mxu0
          %1148 = vrot.lane.b32.xlu0 %v856, 48
          %v1149 = vpop.permute.xlu0 %1148
          %v1151 = vsel %vm834, %v1126, 0
          %v1154 = vsel %vm907, %v1149, 0
          %1156 = vmatpush.bf16.msra.mxu0 0
          %1157 = vmatpush.bf16.msra.mxu0 0
          %1158 = vmatpush.bf16.msra.mxu0 0
          %1159 = vmatpush.bf16.msra.mxu0 0
          %1160 = vmatpush.bf16.msra.mxu0 0
          %1161 = vmatpush.bf16.msra.mxu0 0
          %1162 = vmatpush.bf16.msra.mxu0 0
          %1163 = vmatpush.bf16.msra.mxu0 %v1154
          %1164 = vmatmul.bf16.gmra.mxu0 %v1151
          %v1165 = vpop.f32.mrf.mxu0
          %v1166 = vadd.f32 0.0, %v1165
          %v1167 = vpop.f32.mrf.mxu0
          %1168 = vdwg.mxu0
          %1169 = vrot.lane.b32.xlu0 %v831, 104
          %v1170 = vpop.permute.xlu0 %1169
          %1171 = vrot.lane.b32.xlu0 %v831, 72
          %v1172 = vpop.permute.xlu0 %1171
          %v1174 = vsel %vm834, %v1170, 0
          %v1177 = vsel %vm834, %v1172, 0
          %1179 = vmatpush.bf16.xpose.msra.mxu0 0
          %1180 = vmatpush.bf16.xpose.msra.mxu0 0
          %1181 = vmatpush.bf16.xpose.msra.mxu0 0
          %1182 = vmatpush.bf16.xpose.msra.mxu0 0
          %1183 = vmatpush.bf16.xpose.msra.mxu0 0
          %1184 = vmatpush.bf16.xpose.msra.mxu0 0
          %1185 = vmatpush.bf16.xpose.msra.mxu0 0
          %1186 = vmatpush.bf16.xpose.msra.mxu0 %v1177
          %1187 = vmatmul.bf16.gmra.mxu0 %v1174
          %v1188 = vpop.f32.mrf.mxu0
          %v1189 = vadd.f32 %v825, %v1188
          %v1190 = vpop.f32.mrf.mxu0
          %1191 = vdwg.mxu0
          %1192 = vrot.lane.b32.xlu0 %v856, 104
          %v1193 = vpop.permute.xlu0 %1192
          %1194 = vrot.lane.b32.xlu0 %v856, 72
          %v1195 = vpop.permute.xlu0 %1194
          %v1197 = vsel %vm834, %v1193, 0
          %v1200 = vsel %vm834, %v1195, 0
          %1202 = vmatpush.bf16.xpose.msra.mxu0 0
          %1203 = vmatpush.bf16.xpose.msra.mxu0 0
          %1204 = vmatpush.bf16.xpose.msra.mxu0 0
          %1205 = vmatpush.bf16.xpose.msra.mxu0 0
          %1206 = vmatpush.bf16.xpose.msra.mxu0 0
          %1207 = vmatpush.bf16.xpose.msra.mxu0 0
          %1208 = vmatpush.bf16.xpose.msra.mxu0 0
          %1209 = vmatpush.bf16.xpose.msra.mxu0 %v1200
          %1210 = vmatmul.bf16.gmra.mxu0 %v1197
          %v1211 = vpop.f32.mrf.mxu0
          %v1212 = vadd.f32 %v826, %v1211
          %v1213 = vpop.f32.mrf.mxu0
          %1214 = vdwg.mxu0
          %v1215 = vsel %vm834, %v1189, -inf
          %1216 = vmax.xlane.f32.xlu0 %v1215
          %v1217 = vpop.xlane.xlu0 %1216
          %v1218 = vsel %vm834, %v1212, -inf
          %1219 = vmax.xlane.f32.xlu0 %v1218
          %v1220 = vpop.xlane.xlu0 %1219
          %v1221 = vsub.f32 %v1189, %v1217
          %v1222 = vsub.f32 %v1212, %v1220
          %v1223 = vmul.f32 %v1221, 1.442695
          %v1224 = vpow.pop %v1223
          %v1225 = vmul.f32 %v1222, 1.442695
          %v1226 = vpow.pop %v1225
          %v1227 = vsel %vm834, %v1224, 0.0
          %1228 = vadd.xlane.f32.xlu0 %v1227
          %v1229 = vpop.xlane.xlu0 %1228
          %v1230 = vsel %vm834, %v1226, 0.0
          %1231 = vadd.xlane.f32.xlu0 %v1230
          %v1232 = vpop.xlane.xlu0 %1231
          %v1233 = vrcp.pop %v1229
          %v1234 = vrcp.pop %v1232
          %v1235 = vmul.f32 %v1224, %v1233
          %v1236 = vmul.f32 %v1226, %v1234
          %v1237 = vpack.c.bf16 %v1235, %v1235
          %v1238 = vpack.c.bf16 %v1236, %v1236
          %1239 = vrot.lane.b32.xlu0 %v831, 40
          %v1240 = vpop.permute.xlu0 %1239
          %v1242 = vsel %vm834, %v1237, 0
          %v1245 = vsel %vm907, %v1240, 0
          %1247 = vmatpush.bf16.msra.mxu0 0
          %1248 = vmatpush.bf16.msra.mxu0 0
          %1249 = vmatpush.bf16.msra.mxu0 0
          %1250 = vmatpush.bf16.msra.mxu0 0
          %1251 = vmatpush.bf16.msra.mxu0 0
          %1252 = vmatpush.bf16.msra.mxu0 0
          %1253 = vmatpush.bf16.msra.mxu0 0
          %1254 = vmatpush.bf16.msra.mxu0 %v1245
          %1255 = vmatmul.bf16.gmra.mxu0 %v1242
          %v1256 = vpop.f32.mrf.mxu0
          %v1257 = vadd.f32 0.0, %v1256
          %v1258 = vpop.f32.mrf.mxu0
          %1259 = vdwg.mxu0
          %1260 = vrot.lane.b32.xlu0 %v856, 40
          %v1261 = vpop.permute.xlu0 %1260
          %v1263 = vsel %vm834, %v1238, 0
          %v1266 = vsel %vm907, %v1261, 0
          %1268 = vmatpush.bf16.msra.mxu0 0
          %1269 = vmatpush.bf16.msra.mxu0 0
          %1270 = vmatpush.bf16.msra.mxu0 0
          %1271 = vmatpush.bf16.msra.mxu0 0
          %1272 = vmatpush.bf16.msra.mxu0 0
          %1273 = vmatpush.bf16.msra.mxu0 0
          %1274 = vmatpush.bf16.msra.mxu0 0
          %1275 = vmatpush.bf16.msra.mxu0 %v1266
          %1276 = vmatmul.bf16.gmra.mxu0 %v1263
          %v1277 = vpop.f32.mrf.mxu0
          %v1278 = vadd.f32 0.0, %v1277
          %v1279 = vpop.f32.mrf.mxu0
          %1280 = vdwg.mxu0
          %1283 = vrot.lane.b32.xlu0 %v1033, 8
          %v1284 = vpop.permute.xlu0 %1283
          %1285 = vrot.lane.b32.xlu0 %v1054, 8
          %v1286 = vpop.permute.xlu0 %1285
          %1291 = vrot.lane.b32.xlu0 %v1145, 16
          %v1292 = vpop.permute.xlu0 %1291
          %1293 = vrot.lane.b32.xlu0 %v1166, 16
          %v1294 = vpop.permute.xlu0 %1293
          %1299 = vrot.lane.b32.xlu0 %v1257, 24
          %v1300 = vpop.permute.xlu0 %1299
          %1301 = vrot.lane.b32.xlu0 %v1278, 24
          %v1302 = vpop.permute.xlu0 %1301
          %v1305 = vsel %vm834, %v921, %v1284
          %v1306 = vsel %vm834, %v942, %v1286
          %vm1307 = vcmask 130048
          %v1308 = vsel %vm1307, %v1305, %v1292
          %v1309 = vsel %vm1307, %v1306, %v1294
          %vm1310 = vcmask 195584
          %v1311 = vsel %vm1310, %v1308, %v1300
          %v1312 = vsel %vm1310, %v1309, %v1302
          %v1313 = vpack.c.bf16 %v1312, %v1311
          %v1314 = vld [vmem:[%s717] sm:$0xf]
          %v1315 = vld [vmem:[%s717 + $0x4] sm:$0xf]
          %v1316 = vld [vmem:[%s717 + $0x8] sm:$0xf]
          %v1317 = vld [vmem:[%s717 + $0xc] sm:$0xf]
          %v1318 = vld [vmem:[%s720] sm:$0x1]
          %v1320 = vperm.slane %v1318, 0
          %v1326 = vunpack.c.l.b16 %v1314
          %v1327 = vunpack.c.l.b16 %v1315
          %v1328 = vunpack.c.l.b16 %v1316
          %v1329 = vunpack.c.l.b16 %v1317
          %v1330 = vpack.c.b16 %v1327, %v1326
          %v1331 = vpack.c.b16 %v1329, %v1328
          %v1335 = vsel %vm807, %v1313, 0
          %1337 = vmatpush.bf16.msra.mxu0 0
          %1338 = vmatpush.bf16.msra.mxu0 0
          %1339 = vmatpush.bf16.msra.mxu0 0
          %1340 = vmatpush.bf16.msra.mxu0 0
          %1341 = vmatpush.bf16.msra.mxu0 0
          %1342 = vmatpush.bf16.msra.mxu0 0
          %1343 = vmatpush.bf16.msra.mxu0 %v1331
          %1344 = vmatpush.bf16.msra.mxu0 %v1330
          %1345 = vmatmul.bf16.gmra.mxu0 %v1335
          %v1346 = vpop.f32.mrf.mxu0
          %v1347 = vadd.f32 %v1320, %v1346
          %v1348 = vpop.f32.mrf.mxu0
          %v1349 = vadd.f32 %v1320, %v1348
          %1350 = vdwg.mxu0
          %v1351 = vadd.f32 %v784, %v1347
          %v1352 = vadd.f32 %v785, %v1349
          %v1353 = vld [vmem:[%s723] sm:$0x1]
          %v1354 = vld [vmem:[%s726] sm:$0x1]
          %v1355 = vsel %vm807, %v1351, 0.0
          %1356 = vadd.xlane.f32.xlu0 %v1355
          %v1357 = vpop.xlane.xlu0 %1356
          %v1358 = vsel %vm807, %v1352, 0.0
          %1359 = vadd.xlane.f32.xlu0 %v1358
          %v1360 = vpop.xlane.xlu0 %1359
          %v1361 = vrcp.pop 32.0
          %v1362 = vmul.f32 32.0, %v1361
          %v1363 = vsub.f32 1.0, %v1362
          %v1364 = vmul.f32 %v1361, %v1363
          %v1365 = vadd.f32 %v1361, %v1364
          %vm1366 = vweird.f32 %v1361
          %v1367 = vsel %vm1366, %v1361, %v1365
          %v1368 = vmul.f32 %v1357, %v1367
          %v1369 = vmul.f32 %v1360, %v1367
          %v1370 = vsub.f32 %v1351, %v1368
          %v1371 = vsub.f32 %v1352, %v1369
          %v1372 = vmul.f32 %v1370, %v1370
          %v1373 = vmul.f32 %v1371, %v1371
          %v1374 = vsel %vm807, %v1372, 0.0
          %1375 = vadd.xlane.f32.xlu0 %v1374
          %v1376 = vpop.xlane.xlu0 %1375
          %v1377 = vsel %vm807, %v1373, 0.0
          %1378 = vadd.xlane.f32.xlu0 %v1377
          %v1379 = vpop.xlane.xlu0 %1378
          %v1380 = vmul.f32 %v1376, %v1367
          %v1381 = vmul.f32 %v1379, %v1367
          %v1382 = vadd.f32 %v1380, 1e-05
          %v1383 = vadd.f32 %v1381, 1e-05
          %v1384 = vrsqrt.pop %v1382
          %v1385 = vmul.f32 %v1384, %v1382
          %v1386 = vmul.f32 %v1385, %v1384
          %v1387 = vmul.f32 0.5, %v1386
          %v1388 = vsub.f32 1.5, %v1387
          %v1389 = vmul.f32 %v1384, %v1388
          %vm1390 = vweird.f32 %v1382
          %vm1391 = vweird.f32 %v1384
          %vm1392 = vmor %vm1390, %vm1391
          %v1393 = vsel %vm1392, %v1384, %v1389
          %v1394 = vrsqrt.pop %v1383
          %v1395 = vmul.f32 %v1394, %v1383
          %v1396 = vmul.f32 %v1395, %v1394
          %v1397 = vmul.f32 0.5, %v1396
          %v1398 = vsub.f32 1.5, %v1397
          %v1399 = vmul.f32 %v1394, %v1398
          %vm1400 = vweird.f32 %v1383
          %vm1401 = vweird.f32 %v1394
          %vm1402 = vmor %vm1400, %vm1401
          %v1403 = vsel %vm1402, %v1394, %v1399
          %v1404 = vmul.f32 %v1370, %v1393
          %v1405 = vmul.f32 %v1371, %v1403
          %v1407 = vperm.slane %v1353, 0
          %v1409 = vmul.f32 %v1404, %v1407
          %v1410 = vmul.f32 %v1405, %v1407
          %v1412 = vperm.slane %v1354, 0
          %v1414 = vadd.f32 %v1409, %v1412
          %v1415 = vadd.f32 %v1410, %v1412
          %1416 = vst.msk [vmem:[#allocation3] sm:$0xff] %vm807, %v1414
          %1417 = vst.msk [vmem:[#allocation3 + $0x8] sm:$0xff] %vm807, %v1415
          %1418 = vst.msk [vmem:[#allocation4] sm:$0xff] %vm807, 0.0
          %1419 = vst.msk [vmem:[#allocation4 + $0x8] sm:$0xff] %vm807, 0.0
        $region115: #{tpu_custom_call.1} parent=98 // pred_fallthru
          _
        %v1420 = vld [vmem:[#allocation3] sm:$0xff]
        %v1421 = vld [vmem:[#allocation3 + $0x8] sm:$0xff]
        %v1422 = vpack.c.bf16 %v1421, %v1420
        %v1423 = vld [vmem:[%s617] sm:$0xff]
        %v1424 = vld [vmem:[%s617 + $0x8] sm:$0xff]
        %v1425 = vld [vmem:[%s617 + $0x10] sm:$0xff]
        %v1426 = vld [vmem:[%s617 + $0x18] sm:$0xff]
        %v1427 = vld [vmem:[%s617 + $0x20] sm:$0xff]
        %v1428 = vld [vmem:[%s617 + $0x28] sm:$0xff]
        %v1429 = vld [vmem:[%s617 + $0x30] sm:$0xff]
        %v1430 = vld [vmem:[%s617 + $0x38] sm:$0xff]
        %v1431 = vld [vmem:[%s735] sm:$0xf]
        %v1433 = vperm.slane %v1431, 0
        %v1434 = vperm.slane %v1431, 1
        %v1435 = vperm.slane %v1431, 2
        %v1436 = vperm.slane %v1431, 3
        %v1449 = vunpack.c.l.b16 %v1423
        %v1450 = vunpack.c.h.b16 %v1423
        %v1451 = vunpack.c.l.b16 %v1424
        %v1452 = vunpack.c.h.b16 %v1424
        %v1453 = vunpack.c.l.b16 %v1425
        %v1454 = vunpack.c.h.b16 %v1425
        %v1455 = vunpack.c.l.b16 %v1426
        %v1456 = vunpack.c.h.b16 %v1426
        %v1457 = vunpack.c.l.b16 %v1427
        %v1458 = vunpack.c.h.b16 %v1427
        %v1459 = vunpack.c.l.b16 %v1428
        %v1460 = vunpack.c.h.b16 %v1428
        %v1461 = vunpack.c.l.b16 %v1429
        %v1462 = vunpack.c.h.b16 %v1429
        %v1463 = vunpack.c.l.b16 %v1430
        %v1464 = vunpack.c.h.b16 %v1430
        %v1465 = vpack.c.b16 %v1453, %v1449
        %v1466 = vpack.c.b16 %v1454, %v1450
        %v1467 = vpack.c.b16 %v1455, %v1451
        %v1468 = vpack.c.b16 %v1456, %v1452
        %v1469 = vpack.c.b16 %v1461, %v1457
        %v1470 = vpack.c.b16 %v1462, %v1458
        %v1471 = vpack.c.b16 %v1463, %v1459
        %v1472 = vpack.c.b16 %v1464, %v1460
        %vm1481 = vcmask 261120
        %v1483 = vsel %vm1481, %v1422, 0
        %1485 = vmatpush.bf16.msra.mxu0 0
        %1486 = vmatpush.bf16.msra.mxu0 0
        %1487 = vmatpush.bf16.msra.mxu0 0
        %1488 = vmatpush.bf16.msra.mxu0 0
        %1489 = vmatpush.bf16.msra.mxu0 0
        %1490 = vmatpush.bf16.msra.mxu0 0
        %1491 = vmatpush.bf16.msra.mxu0 %v1469
        %1492 = vmatpush.bf16.msra.mxu0 %v1465
        %1493 = vmatmul.bf16.gmra.mxu0 %v1483
        %v1494 = vpop.f32.mrf.mxu0
        %v1495 = vadd.f32 %v1433, %v1494
        %v1496 = vpop.f32.mrf.mxu0
        %v1497 = vadd.f32 %v1433, %v1496
        %1498 = vdwg.mxu0
        %1499 = vmatpush.bf16.msra.mxu0 0
        %1500 = vmatpush.bf16.msra.mxu0 0
        %1501 = vmatpush.bf16.msra.mxu0 0
        %1502 = vmatpush.bf16.msra.mxu0 0
        %1503 = vmatpush.bf16.msra.mxu0 0
        %1504 = vmatpush.bf16.msra.mxu0 0
        %1505 = vmatpush.bf16.msra.mxu0 %v1470
        %1506 = vmatpush.bf16.msra.mxu0 %v1466
        %1507 = vmatmul.bf16.gmra.mxu0 %v1483
        %v1508 = vpop.f32.mrf.mxu0
        %v1509 = vadd.f32 %v1434, %v1508
        %v1510 = vpop.f32.mrf.mxu0
        %v1511 = vadd.f32 %v1434, %v1510
        %1512 = vdwg.mxu0
        %1513 = vmatpush.bf16.msra.mxu0 0
        %1514 = vmatpush.bf16.msra.mxu0 0
        %1515 = vmatpush.bf16.msra.mxu0 0
        %1516 = vmatpush.bf16.msra.mxu0 0
        %1517 = vmatpush.bf16.msra.mxu0 0
        %1518 = vmatpush.bf16.msra.mxu0 0
        %1519 = vmatpush.bf16.msra.mxu0 %v1471
        %1520 = vmatpush.bf16.msra.mxu0 %v1467
        %1521 = vmatmul.bf16.gmra.mxu0 %v1483
        %v1522 = vpop.f32.mrf.mxu0
        %v1523 = vadd.f32 %v1435, %v1522
        %v1524 = vpop.f32.mrf.mxu0
        %v1525 = vadd.f32 %v1435, %v1524
        %1526 = vdwg.mxu0
        %1527 = vmatpush.bf16.msra.mxu0 0
        %1528 = vmatpush.bf16.msra.mxu0 0
        %1529 = vmatpush.bf16.msra.mxu0 0
        %1530 = vmatpush.bf16.msra.mxu0 0
        %1531 = vmatpush.bf16.msra.mxu0 0
        %1532 = vmatpush.bf16.msra.mxu0 0
        %1533 = vmatpush.bf16.msra.mxu0 %v1472
        %1534 = vmatpush.bf16.msra.mxu0 %v1468
        %1535 = vmatmul.bf16.gmra.mxu0 %v1483
        %v1536 = vpop.f32.mrf.mxu0
        %v1537 = vadd.f32 %v1436, %v1536
        %v1538 = vpop.f32.mrf.mxu0
        %v1539 = vadd.f32 %v1436, %v1538
        %1540 = vdwg.mxu0
        %v1541 = vmax.f32 %v1495, 0.0
        %v1542 = vmax.f32 %v1509, 0.0
        %v1543 = vmax.f32 %v1523, 0.0
        %v1544 = vmax.f32 %v1537, 0.0
        %v1545 = vmax.f32 %v1497, 0.0
        %v1546 = vmax.f32 %v1511, 0.0
        %v1547 = vmax.f32 %v1525, 0.0
        %v1548 = vmax.f32 %v1539, 0.0
        %v1549 = vld [vmem:[#allocation4] sm:$0xff]
        %v1550 = vld [vmem:[#allocation4 + $0x8] sm:$0xff]
        %v1551 = vpack.c.bf16 %v1545, %v1541
        %v1552 = vpack.c.bf16 %v1546, %v1542
        %v1553 = vpack.c.bf16 %v1547, %v1543
        %v1554 = vpack.c.bf16 %v1548, %v1544
        %v1555 = vld [vmem:[%s745] sm:$0xf]
        %v1556 = vld [vmem:[%s745 + $0x4] sm:$0xf]
        %v1557 = vld [vmem:[%s745 + $0x8] sm:$0xf]
        %v1558 = vld [vmem:[%s745 + $0xc] sm:$0xf]
        %v1559 = vld [vmem:[%s745 + $0x10] sm:$0xf]
        %v1560 = vld [vmem:[%s745 + $0x14] sm:$0xf]
        %v1561 = vld [vmem:[%s745 + $0x18] sm:$0xf]
        %v1562 = vld [vmem:[%s745 + $0x1c] sm:$0xf]
        %v1563 = vld [vmem:[%s745 + $0x20] sm:$0xf]
        %v1564 = vld [vmem:[%s745 + $0x24] sm:$0xf]
        %v1565 = vld [vmem:[%s745 + $0x28] sm:$0xf]
        %v1566 = vld [vmem:[%s745 + $0x2c] sm:$0xf]
        %v1567 = vld [vmem:[%s745 + $0x30] sm:$0xf]
        %v1568 = vld [vmem:[%s745 + $0x34] sm:$0xf]
        %v1569 = vld [vmem:[%s745 + $0x38] sm:$0xf]
        %v1570 = vld [vmem:[%s745 + $0x3c] sm:$0xf]
        %v1571 = vld [vmem:[%s745 + $0x40] sm:$0xf]
        %v1572 = vld [vmem:[%s745 + $0x44] sm:$0xf]
        %v1573 = vld [vmem:[%s745 + $0x48] sm:$0xf]
        %v1574 = vld [vmem:[%s745 + $0x4c] sm:$0xf]
        %v1575 = vld [vmem:[%s745 + $0x50] sm:$0xf]
        %v1576 = vld [vmem:[%s745 + $0x54] sm:$0xf]
        %v1577 = vld [vmem:[%s745 + $0x58] sm:$0xf]
        %v1578 = vld [vmem:[%s745 + $0x5c] sm:$0xf]
        %v1579 = vld [vmem:[%s745 + $0x60] sm:$0xf]
        %v1580 = vld [vmem:[%s745 + $0x64] sm:$0xf]
        %v1581 = vld [vmem:[%s745 + $0x68] sm:$0xf]
        %v1582 = vld [vmem:[%s745 + $0x6c] sm:$0xf]
        %v1583 = vld [vmem:[%s745 + $0x70] sm:$0xf]
        %v1584 = vld [vmem:[%s745 + $0x74] sm:$0xf]
        %v1585 = vld [vmem:[%s745 + $0x78] sm:$0xf]
        %v1586 = vld [vmem:[%s745 + $0x7c] sm:$0xf]
        %v1587 = vld [vmem:[%s745 + $0x80] sm:$0xf]
        %v1588 = vld [vmem:[%s745 + $0x84] sm:$0xf]
        %v1589 = vld [vmem:[%s745 + $0x88] sm:$0xf]
        %v1590 = vld [vmem:[%s745 + $0x8c] sm:$0xf]
        %v1591 = vld [vmem:[%s745 + $0x90] sm:$0xf]
        %v1592 = vld [vmem:[%s745 + $0x94] sm:$0xf]
        %v1593 = vld [vmem:[%s745 + $0x98] sm:$0xf]
        %v1594 = vld [vmem:[%s745 + $0x9c] sm:$0xf]
        %v1595 = vld [vmem:[%s745 + $0xa0] sm:$0xf]
        %v1596 = vld [vmem:[%s745 + $0xa4] sm:$0xf]
        %v1597 = vld [vmem:[%s745 + $0xa8] sm:$0xf]
        %v1598 = vld [vmem:[%s745 + $0xac] sm:$0xf]
        %v1599 = vld [vmem:[%s745 + $0xb0] sm:$0xf]
        %v1600 = vld [vmem:[%s745 + $0xb4] sm:$0xf]
        %v1601 = vld [vmem:[%s745 + $0xb8] sm:$0xf]
        %v1602 = vld [vmem:[%s745 + $0xbc] sm:$0xf]
        %v1603 = vld [vmem:[%s745 + $0xc0] sm:$0xf]
        %v1604 = vld [vmem:[%s745 + $0xc4] sm:$0xf]
        %v1605 = vld [vmem:[%s745 + $0xc8] sm:$0xf]
        %v1606 = vld [vmem:[%s745 + $0xcc] sm:$0xf]
        %v1607 = vld [vmem:[%s745 + $0xd0] sm:$0xf]
        %v1608 = vld [vmem:[%s745 + $0xd4] sm:$0xf]
        %v1609 = vld [vmem:[%s745 + $0xd8] sm:$0xf]
        %v1610 = vld [vmem:[%s745 + $0xdc] sm:$0xf]
        %v1611 = vld [vmem:[%s745 + $0xe0] sm:$0xf]
        %v1612 = vld [vmem:[%s745 + $0xe4] sm:$0xf]
        %v1613 = vld [vmem:[%s745 + $0xe8] sm:$0xf]
        %v1614 = vld [vmem:[%s745 + $0xec] sm:$0xf]
        %v1615 = vld [vmem:[%s745 + $0xf0] sm:$0xf]
        %v1616 = vld [vmem:[%s745 + $0xf4] sm:$0xf]
        %v1617 = vld [vmem:[%s745 + $0xf8] sm:$0xf]
        %v1618 = vld [vmem:[%s745 + $0xfc] sm:$0xf]
        %v1683 = vunpack.c.l.b16 %v1555
        %v1684 = vunpack.c.l.b16 %v1556
        %v1685 = vunpack.c.l.b16 %v1557
        %v1686 = vunpack.c.l.b16 %v1558
        %v1687 = vunpack.c.l.b16 %v1559
        %v1688 = vunpack.c.l.b16 %v1560
        %v1689 = vunpack.c.l.b16 %v1561
        %v1690 = vunpack.c.l.b16 %v1562
        %v1691 = vunpack.c.l.b16 %v1563
        %v1692 = vunpack.c.l.b16 %v1564
        %v1693 = vunpack.c.l.b16 %v1565
        %v1694 = vunpack.c.l.b16 %v1566
        %v1695 = vunpack.c.l.b16 %v1567
        %v1696 = vunpack.c.l.b16 %v1568
        %v1697 = vunpack.c.l.b16 %v1569
        %v1698 = vunpack.c.l.b16 %v1570
        %v1699 = vunpack.c.l.b16 %v1571
        %v1700 = vunpack.c.l.b16 %v1572
        %v1701 = vunpack.c.l.b16 %v1573
        %v1702 = vunpack.c.l.b16 %v1574
        %v1703 = vunpack.c.l.b16 %v1575
        %v1704 = vunpack.c.l.b16 %v1576
        %v1705 = vunpack.c.l.b16 %v1577
        %v1706 = vunpack.c.l.b16 %v1578
        %v1707 = vunpack.c.l.b16 %v1579
        %v1708 = vunpack.c.l.b16 %v1580
        %v1709 = vunpack.c.l.b16 %v1581
        %v1710 = vunpack.c.l.b16 %v1582
        %v1711 = vunpack.c.l.b16 %v1583
        %v1712 = vunpack.c.l.b16 %v1584
        %v1713 = vunpack.c.l.b16 %v1585
        %v1714 = vunpack.c.l.b16 %v1586
        %v1715 = vunpack.c.l.b16 %v1587
        %v1716 = vunpack.c.l.b16 %v1588
        %v1717 = vunpack.c.l.b16 %v1589
        %v1718 = vunpack.c.l.b16 %v1590
        %v1719 = vunpack.c.l.b16 %v1591
        %v1720 = vunpack.c.l.b16 %v1592
        %v1721 = vunpack.c.l.b16 %v1593
        %v1722 = vunpack.c.l.b16 %v1594
        %v1723 = vunpack.c.l.b16 %v1595
        %v1724 = vunpack.c.l.b16 %v1596
        %v1725 = vunpack.c.l.b16 %v1597
        %v1726 = vunpack.c.l.b16 %v1598
        %v1727 = vunpack.c.l.b16 %v1599
        %v1728 = vunpack.c.l.b16 %v1600
        %v1729 = vunpack.c.l.b16 %v1601
        %v1730 = vunpack.c.l.b16 %v1602
        %v1731 = vunpack.c.l.b16 %v1603
        %v1732 = vunpack.c.l.b16 %v1604
        %v1733 = vunpack.c.l.b16 %v1605
        %v1734 = vunpack.c.l.b16 %v1606
        %v1735 = vunpack.c.l.b16 %v1607
        %v1736 = vunpack.c.l.b16 %v1608
        %v1737 = vunpack.c.l.b16 %v1609
        %v1738 = vunpack.c.l.b16 %v1610
        %v1739 = vunpack.c.l.b16 %v1611
        %v1740 = vunpack.c.l.b16 %v1612
        %v1741 = vunpack.c.l.b16 %v1613
        %v1742 = vunpack.c.l.b16 %v1614
        %v1743 = vunpack.c.l.b16 %v1615
        %v1744 = vunpack.c.l.b16 %v1616
        %v1745 = vunpack.c.l.b16 %v1617
        %v1746 = vunpack.c.l.b16 %v1618
        %v1747 = vpack.c.b16 %v1684, %v1683
        %v1748 = vpack.c.b16 %v1686, %v1685
        %v1749 = vpack.c.b16 %v1688, %v1687
        %v1750 = vpack.c.b16 %v1690, %v1689
        %v1751 = vpack.c.b16 %v1692, %v1691
        %v1752 = vpack.c.b16 %v1694, %v1693
        %v1753 = vpack.c.b16 %v1696, %v1695
        %v1754 = vpack.c.b16 %v1698, %v1697
        %v1755 = vpack.c.b16 %v1700, %v1699
        %v1756 = vpack.c.b16 %v1702, %v1701
        %v1757 = vpack.c.b16 %v1704, %v1703
        %v1758 = vpack.c.b16 %v1706, %v1705
        %v1759 = vpack.c.b16 %v1708, %v1707
        %v1760 = vpack.c.b16 %v1710, %v1709
        %v1761 = vpack.c.b16 %v1712, %v1711
        %v1762 = vpack.c.b16 %v1714, %v1713
        %v1763 = vpack.c.b16 %v1716, %v1715
        %v1764 = vpack.c.b16 %v1718, %v1717
        %v1765 = vpack.c.b16 %v1720, %v1719
        %v1766 = vpack.c.b16 %v1722, %v1721
        %v1767 = vpack.c.b16 %v1724, %v1723
        %v1768 = vpack.c.b16 %v1726, %v1725
        %v1769 = vpack.c.b16 %v1728, %v1727
        %v1770 = vpack.c.b16 %v1730, %v1729
        %v1771 = vpack.c.b16 %v1732, %v1731
        %v1772 = vpack.c.b16 %v1734, %v1733
        %v1773 = vpack.c.b16 %v1736, %v1735
        %v1774 = vpack.c.b16 %v1738, %v1737
        %v1775 = vpack.c.b16 %v1740, %v1739
        %v1776 = vpack.c.b16 %v1742, %v1741
        %v1777 = vpack.c.b16 %v1744, %v1743
        %v1778 = vpack.c.b16 %v1746, %v1745
        %1811 = vmatpush.bf16.msra.mxu0 %v1754
        %1812 = vmatpush.bf16.msra.mxu0 %v1753
        %1813 = vmatpush.bf16.msra.mxu0 %v1752
        %1814 = vmatpush.bf16.msra.mxu0 %v1751
        %1815 = vmatpush.bf16.msra.mxu0 %v1750
        %1816 = vmatpush.bf16.msra.mxu0 %v1749
        %1817 = vmatpush.bf16.msra.mxu0 %v1748
        %1818 = vmatpush.bf16.msra.mxu0 %v1747
        %1819 = vmatmul.bf16.gmra.mxu0 %v1551
        %v1820 = vpop.f32.mrf.mxu0
        %v1821 = vadd.f32 0.0, %v1820
        %v1822 = vpop.f32.mrf.mxu0
        %v1823 = vadd.f32 0.0, %v1822
        %1824 = vdwg.mxu0
        %1825 = vmatpush.bf16.msra.mxu0 %v1762
        %1826 = vmatpush.bf16.msra.mxu0 %v1761
        %1827 = vmatpush.bf16.msra.mxu0 %v1760
        %1828 = vmatpush.bf16.msra.mxu0 %v1759
        %1829 = vmatpush.bf16.msra.mxu0 %v1758
        %1830 = vmatpush.bf16.msra.mxu0 %v1757
        %1831 = vmatpush.bf16.msra.mxu0 %v1756
        %1832 = vmatpush.bf16.msra.mxu0 %v1755
        %1833 = vmatmul.bf16.gmra.mxu0 %v1552
        %v1834 = vpop.f32.mrf.mxu0
        %v1835 = vadd.f32 %v1821, %v1834
        %v1836 = vpop.f32.mrf.mxu0
        %v1837 = vadd.f32 %v1823, %v1836
        %1838 = vdwg.mxu0
        %1839 = vmatpush.bf16.msra.mxu0 %v1770
        %1840 = vmatpush.bf16.msra.mxu0 %v1769
        %1841 = vmatpush.bf16.msra.mxu0 %v1768
        %1842 = vmatpush.bf16.msra.mxu0 %v1767
        %1843 = vmatpush.bf16.msra.mxu0 %v1766
        %1844 = vmatpush.bf16.msra.mxu0 %v1765
        %1845 = vmatpush.bf16.msra.mxu0 %v1764
        %1846 = vmatpush.bf16.msra.mxu0 %v1763
        %1847 = vmatmul.bf16.gmra.mxu0 %v1553
        %v1848 = vpop.f32.mrf.mxu0
        %v1849 = vadd.f32 %v1835, %v1848
        %v1850 = vpop.f32.mrf.mxu0
        %v1851 = vadd.f32 %v1837, %v1850
        %1852 = vdwg.mxu0
        %1853 = vmatpush.bf16.msra.mxu0 %v1778
        %1854 = vmatpush.bf16.msra.mxu0 %v1777
        %1855 = vmatpush.bf16.msra.mxu0 %v1776
        %1856 = vmatpush.bf16.msra.mxu0 %v1775
        %1857 = vmatpush.bf16.msra.mxu0 %v1774
        %1858 = vmatpush.bf16.msra.mxu0 %v1773
        %1859 = vmatpush.bf16.msra.mxu0 %v1772
        %1860 = vmatpush.bf16.msra.mxu0 %v1771
        %1861 = vmatmul.bf16.gmra.mxu0 %v1554
        %v1862 = vpop.f32.mrf.mxu0
        %v1863 = vadd.f32 %v1849, %v1862
        %v1864 = vpop.f32.mrf.mxu0
        %v1865 = vadd.f32 %v1851, %v1864
        %1866 = vdwg.mxu0
        %v1867 = vadd.f32 %v1549, %v1863
        %v1868 = vadd.f32 %v1550, %v1865
        %1869 = vst.msk [vmem:[#allocation4] sm:$0xff] %vm1481, %v1867
        %1870 = vst.msk [vmem:[#allocation4 + $0x8] sm:$0xff] %vm1481, %v1868
        %p1871 = scmp.eq.s32.totalorder %s33, 3
        // Predicated region
        $region116: #{tpu_custom_call.1} parent=98 // pred_check
          %p1872 = pneg %p1871
        $region117: #{tpu_custom_call.1} parent=98 // pred_check_branch
          %1874 = sbr.rel (%p1872) target = $region119
        $region118: #{tpu_custom_call.1} parent=98 // pred_region
          %v1875 = vld [vmem:[#allocation4] sm:$0xff]
          %v1876 = vld [vmem:[#allocation4 + $0x8] sm:$0xff]
          %v1877 = vadd.f32 %v1420, %v1875
          %v1878 = vadd.f32 %v1421, %v1876
          %v1879 = vld [vmem:[%s749] sm:$0x1]
          %v1881 = vperm.slane %v1879, 0
          %v1883 = vadd.f32 %v1877, %v1881
          %v1884 = vadd.f32 %v1878, %v1881
          %v1885 = vld [vmem:[%s752] sm:$0x1]
          %v1886 = vld [vmem:[%s755] sm:$0x1]
          %v1887 = vsel %vm1481, %v1883, 0.0
          %1888 = vadd.xlane.f32.xlu0 %v1887
          %v1889 = vpop.xlane.xlu0 %1888
          %v1890 = vsel %vm1481, %v1884, 0.0
          %1891 = vadd.xlane.f32.xlu0 %v1890
          %v1892 = vpop.xlane.xlu0 %1891
          %v1893 = vrcp.pop 32.0
          %v1894 = vmul.f32 32.0, %v1893
          %v1895 = vsub.f32 1.0, %v1894
          %v1896 = vmul.f32 %v1893, %v1895
          %v1897 = vadd.f32 %v1893, %v1896
          %vm1898 = vweird.f32 %v1893
          %v1899 = vsel %vm1898, %v1893, %v1897
          %v1900 = vmul.f32 %v1889, %v1899
          %v1901 = vmul.f32 %v1892, %v1899
          %v1902 = vsub.f32 %v1883, %v1900
          %v1903 = vsub.f32 %v1884, %v1901
          %v1904 = vmul.f32 %v1902, %v1902
          %v1905 = vmul.f32 %v1903, %v1903
          %v1906 = vsel %vm1481, %v1904, 0.0
          %1907 = vadd.xlane.f32.xlu0 %v1906
          %v1908 = vpop.xlane.xlu0 %1907
          %v1909 = vsel %vm1481, %v1905, 0.0
          %1910 = vadd.xlane.f32.xlu0 %v1909
          %v1911 = vpop.xlane.xlu0 %1910
          %v1912 = vmul.f32 %v1908, %v1899
          %v1913 = vmul.f32 %v1911, %v1899
          %v1914 = vadd.f32 %v1912, 1e-05
          %v1915 = vadd.f32 %v1913, 1e-05
          %v1916 = vrsqrt.pop %v1914
          %v1917 = vmul.f32 %v1916, %v1914
          %v1918 = vmul.f32 %v1917, %v1916
          %v1919 = vmul.f32 0.5, %v1918
          %v1920 = vsub.f32 1.5, %v1919
          %v1921 = vmul.f32 %v1916, %v1920
          %vm1922 = vweird.f32 %v1914
          %vm1923 = vweird.f32 %v1916
          %vm1924 = vmor %vm1922, %vm1923
          %v1925 = vsel %vm1924, %v1916, %v1921
          %v1926 = vrsqrt.pop %v1915
          %v1927 = vmul.f32 %v1926, %v1915
          %v1928 = vmul.f32 %v1927, %v1926
          %v1929 = vmul.f32 0.5, %v1928
          %v1930 = vsub.f32 1.5, %v1929
          %v1931 = vmul.f32 %v1926, %v1930
          %vm1932 = vweird.f32 %v1915
          %vm1933 = vweird.f32 %v1926
          %vm1934 = vmor %vm1932, %vm1933
          %v1935 = vsel %vm1934, %v1926, %v1931
          %v1936 = vmul.f32 %v1902, %v1925
          %v1937 = vmul.f32 %v1903, %v1935
          %v1939 = vperm.slane %v1885, 0
          %v1941 = vmul.f32 %v1936, %v1939
          %v1942 = vmul.f32 %v1937, %v1939
          %v1944 = vperm.slane %v1886, 0
          %v1946 = vadd.f32 %v1941, %v1944
          %v1947 = vadd.f32 %v1942, %v1944
          %1948 = vst.msk [vmem:[#allocation9] sm:$0xff] %vm1481, %v1946
          %1949 = vst.msk [vmem:[#allocation9 + $0x8] sm:$0xff] %vm1481, %v1947
        $region119: #{tpu_custom_call.1} parent=98 // pred_fallthru
          _
        // Predicated region
        $region120: #{tpu_custom_call.1} parent=98 // pred_check
          %p1950 = pneg %p434
        $region121: #{tpu_custom_call.1} parent=98 // pred_check_branch
          %1952 = sbr.rel (%p1950) target = $region123
        $region122: #{tpu_custom_call.1} parent=98 // pred_region
          %1954 = vsyncadd [#allocation7], 0
          %s1955 = sshll.u32 [#allocation9], 4
          %s1956 = int_to_ptr.vmem [resolvable:$true] %s1955
          %s1957 = sshll.u32 %s15, 4
          %s1958 = int_to_ptr.hbm [resolvable:$true] %s1957
          %1963 = dma.vmem_to_hbm [thread:$0]  %s1956, 256, %s1958, [#allocation7], 128, 128, 8
        $region123: #{tpu_custom_call.1} parent=98 // pred_fallthru
          _
        // Predicated region
        $region124: #{tpu_custom_call.1} parent=98 // pred_check
          %p1964 = pneg %p434
        $region125: #{tpu_custom_call.1} parent=98 // pred_check_branch
          %1966 = sbr.rel (%p1964) target = $region127
        $region126: #{tpu_custom_call.1} parent=98 // pred_region
          %1968 = dma.done [#allocation7], 256
        $region127: #{tpu_custom_call.1} parent=98 // pred_fallthru
          _
      $region99: #{tpu_custom_call.1} parent=5 // pred_fallthru
        _
      %p1969 = scmp.le.s32.totalorder 2, %s23
      // Predicated region
      $region128: #{tpu_custom_call.1} parent=5 // pred_check
        %p1970 = pneg %p1969
      $region129: #{tpu_custom_call.1} parent=5 // pred_check_branch
        %1972 = sbr.rel (%p1970) target = $region131
      $region130: #{tpu_custom_call.1} parent=5 // pred_region
        %s1973 = ssub.s32 %s23, 2
      $region131: #{tpu_custom_call.1} parent=5 // pred_fallthru
        _
    $region6: #{tpu_custom_call.1} parent=1 // loop_footer
      %s27 = sadd.s32 1, %s23
    $region7: #{tpu_custom_call.1} parent=1 // loop_footer_branch
      %22 = sbr.rel target = $region3
    $region8: #{tpu_custom_call.1} parent=1 // loop_exit
      _
    %1974 = vsyncpa [#allocation6], 1
    %s1975 = scalar_lea.sflag [#allocation6], 1
    %1976 = vsyncpa %s1975, 1
    %1977 = vsyncpa [#allocation7], 1
    %s1978 = scalar_lea.sflag [#allocation7], 1
    %1979 = vsyncpa %s1978, 1

</llo_original>
